<compile_context>
chip_gen: v7x
topology: tpu7x:2x2x1
jax: 0.10.0
libtpu: 0.0.40
codegen_flags: <defaults>
</compile_context>

<pallas_src>
import jax
import jax.numpy as jnp
from jax import lax
from jax.experimental import pallas as pl
from jax.experimental.pallas import tpu as pltpu


def _round_up(x, m):
    return (x + m - 1) // m * m


def _pick_chunk(t, target):
    """Largest divisor of t that is <= target (keeps the time grid exact)."""
    tc = max(1, min(t, target))
    while t % tc:
        tc -= 1
    return tc


def _vmem_limit_bytes():
    """Generation-aware scoped-VMEM limit: ~half of physical VMEM, clamped."""
    try:
        cap = int(pltpu.get_tpu_info().vmem_capacity_bytes)
    except Exception:
        cap = 128 * 1024 * 1024
    return int(min(96 * 1024 * 1024, max(32 * 1024 * 1024, cap // 2)))


# ---------------- tiled linear (lane-dense output, weight-held) ------------- #

def _make_linear_kernel(compute_dtype):
    def kernel(x_ref, w_ref, b_ref, o_ref):
        o_ref[...] = (jnp.dot(x_ref[...].astype(compute_dtype),
                              w_ref[...].astype(compute_dtype),
                              preferred_element_type=jnp.float32)
                      + b_ref[...]).astype(o_ref.dtype)
    return kernel


def linear_tiled(x, w, b, *, tile_n=1024, tile_m=512, compute_dtype=jnp.float32):
    """x: (N, K) @ w: (K, M) + b: (M,) -> (N, M), f32 output.

    M is padded to a multiple of 128 so output stores are lane-dense; the grid
    puts the weight (column) tiles on the slow axis and row tiles on the fast
    axis, so each (K, tm) weight tile is fetched from HBM exactly once and held
    in VMEM while all row tiles sweep past it.
    """
    N, K = x.shape
    M = w.shape[1]
    tn = min(tile_n, _round_up(N, 8))
    tm = min(tile_m, _round_up(M, 128))
    Np = _round_up(N, tn)
    Mp = _round_up(M, tm)
    x_p = jnp.pad(x, ((0, Np - N), (0, 0)))
    w_p = jnp.pad(w, ((0, 0), (0, Mp - M)))
    b_p = jnp.pad(b, (0, Mp - M)).reshape(1, Mp)
    out = pl.pallas_call(
        _make_linear_kernel(compute_dtype),
        out_shape=jax.ShapeDtypeStruct((Np, Mp), jnp.float32),
        grid_spec=pltpu.PrefetchScalarGridSpec(
            num_scalar_prefetch=0,
            grid=(Mp // tm, Np // tn),      # weight tiles slow, row tiles fast
            in_specs=[
                pl.BlockSpec((tn, K), lambda j, i: (i, 0)),
                pl.BlockSpec((K, tm), lambda j, i: (0, j)),
                pl.BlockSpec((1, tm), lambda j, i: (0, j)),
            ],
            out_specs=pl.BlockSpec((tn, tm), lambda j, i: (i, j)),
        ),
        compiler_params=pltpu.CompilerParams(
            dimension_semantics=("parallel", "parallel"),
            vmem_limit_bytes=_vmem_limit_bytes()),
    )(x_p, w_p, b_p)
    return out[:N, :M]


# -------------- single LSTM layer, time-chunked pipelined grid -------------- #

def _make_lstm_layer_kernel(chunk, batch_p, hidden_p, compute_dtype, emit_y,
                            unroll):
    Tc, Bp, Hp = chunk, batch_p, hidden_p

    def kernel(x_ref, w_ih_ref, w_hh_ref, b_ref, h0_ref, c0_ref, *rest):
        if emit_y:
            y_ref, hN_ref, cN_ref, gx_sc = rest
        else:
            hN_ref, cN_ref, gx_sc = rest

        # hN/cN map to the same (resident) output block on every grid step, so
        # they double as the h/c carry across time chunks.
        @pl.when(pl.program_id(0) == 0)
        def _():
            hN_ref[...] = h0_ref[...]
            cN_ref[...] = c0_ref[...]

        # Chunk-wide input projection, hoisted off the serial recurrence: ONE
        # big lane-dense MXU matmul per chunk, overlapped (via BlockSpec
        # pipelining) with the DMA of the next x chunk.
        gx_sc[...] = (jnp.dot(x_ref[...].astype(compute_dtype), w_ih_ref[...],
                              preferred_element_type=jnp.float32)
                      + b_ref[...])

        w_hh = w_hh_ref[...]          # (Hp, 4Hp), pre-transposed, loaded once
        # TODO(synk): hold w_hh weight-stationary in the MXU across the time
        #             loop (pltpu.matmul_push_rhs / matmul_acc_lhs) to take the
        #             per-step RHS push latency off the serial critical path.

        def step(t, carry):
            h, c = carry
            r0 = pl.multiple_of(t * Bp, 8)          # sublane-aligned row offset
            gates = gx_sc[pl.ds(r0, Bp), :] + jnp.dot(
                h.astype(compute_dtype), w_hh, preferred_element_type=jnp.float32)
            # PyTorch gate order: i, f, g, o.  Hp is a multiple of 128 so each
            # slice is a lane-tile-aligned free view (no lane selects / XLU).
            i = jax.nn.sigmoid(gates[:, 0 * Hp:1 * Hp])
            f = jax.nn.sigmoid(gates[:, 1 * Hp:2 * Hp])
            g = jnp.tanh(gates[:, 2 * Hp:3 * Hp])
            o = jax.nn.sigmoid(gates[:, 3 * Hp:4 * Hp])
            c_new = f * c + i * g                    # gate/state math kept f32
            h_new = o * jnp.tanh(c_new)
            if emit_y:
                y_ref[pl.ds(r0, Bp), :] = h_new      # lane-dense (Bp, Hp) store
            return (h_new, c_new)

        h_fin, c_fin = lax.fori_loop(0, Tc, step, (hN_ref[...], cN_ref[...]),
                                     unroll=unroll)
        hN_ref[...] = h_fin
        cN_ref[...] = c_fin

    return kernel


def lstm_layer(x2d, w_ih, w_hh, b, h0, c0, *, batch_p, time_chunk,
               emit_y=True, compute_dtype=jnp.float32, unroll=8):
    """One LSTM layer over the whole (time-major, batch-padded) sequence.

    x2d: (T*Bp, E) time-major activations; w_ih: (E, 4Hp); w_hh: (Hp, 4Hp);
    b: (1, 4Hp) folded b_ih + b_hh; h0/c0: (Bp, Hp).
    Returns (y2d, hN, cN) if emit_y else (hN, cN); y2d is (T*Bp, Hp) f32.
    grid = (T//Tc,) "arbitrary": bounded VMEM and pipelined x-chunk DMA.
    """
    Bp = batch_p
    TB, E = x2d.shape
    T = TB // Bp
    Hp = w_hh.shape[0]
    G = 4 * Hp
    Tc = time_chunk
    assert T % Tc == 0, (T, Tc)

    kernel = _make_lstm_layer_kernel(Tc, Bp, Hp, compute_dtype, emit_y,
                                     unroll=min(unroll, Tc))

    out_shape = []
    out_specs = []
    if emit_y:
        out_shape.append(jax.ShapeDtypeStruct((TB, Hp), jnp.float32))
        out_specs.append(pl.BlockSpec((Tc * Bp, Hp), lambda c: (c, 0)))
    out_shape += [jax.ShapeDtypeStruct((Bp, Hp), jnp.float32)] * 2
    out_specs += [pl.BlockSpec((Bp, Hp), lambda c: (0, 0)),
                  pl.BlockSpec((Bp, Hp), lambda c: (0, 0))]

    # TODO(synk): on v7x, add a 'parallel' batch-tile grid axis (>=128 rows per
    #             tile) so the recurrence is sharded across the 2 TensorCores.
    return pl.pallas_call(
        kernel,
        out_shape=tuple(out_shape),
        grid_spec=pltpu.PrefetchScalarGridSpec(
            num_scalar_prefetch=0,
            grid=(T // Tc,),
            in_specs=[
                pl.BlockSpec((Tc * Bp, E), lambda c: (c, 0)),
                pl.BlockSpec((E, G), lambda c: (0, 0)),
                pl.BlockSpec((Hp, G), lambda c: (0, 0)),
                pl.BlockSpec((1, G), lambda c: (0, 0)),
                pl.BlockSpec((Bp, Hp), lambda c: (0, 0)),
                pl.BlockSpec((Bp, Hp), lambda c: (0, 0)),
            ],
            out_specs=tuple(out_specs),
            scratch_shapes=[pltpu.VMEM((Tc * Bp, G), jnp.float32)],
        ),
        compiler_params=pltpu.CompilerParams(
            dimension_semantics=("arbitrary",),
            vmem_limit_bytes=_vmem_limit_bytes()),
    )(x2d, w_ih, w_hh, b, h0, c0)


# ------------------------------ parameter prep ------------------------------ #

def _pad_gates_last(w, h, hp):
    """Pad the last (4*h) gate axis to 4*hp, padding each of the i/f/g/o gate
    blocks independently so the PyTorch gate layout is preserved."""
    lead = w.shape[:-1]
    w4 = w.reshape(lead + (4, h))
    pad = [(0, 0)] * (len(lead) + 1) + [(0, hp - h)]
    return jnp.pad(w4, pad).reshape(lead + (4 * hp,))


def _pad_lstm_layer(w_ih, w_hh, b, h, hp, pad_input_rows):
    w_ih_p = _pad_gates_last(w_ih, h, hp)
    if pad_input_rows:                      # layers >= 1: input width H -> Hp
        w_ih_p = jnp.pad(w_ih_p, ((0, hp - h), (0, 0)))
    w_hh_p = jnp.pad(_pad_gates_last(w_hh, h, hp), ((0, hp - h), (0, 0)))
    b_p = _pad_gates_last(b.reshape(1, 4 * h), h, hp)
    return w_ih_p, w_hh_p, b_p


def init_params(key, input_dim, output_dim, embed_size, hidden_size,
                num_layers, pad_idx):
    keys = iter(jax.random.split(key, 4 + 8 * num_layers))
    kscale = 1.0 / float(hidden_size) ** 0.5

    def unif(shape):
        return jax.random.uniform(next(keys), shape, jnp.float32, -kscale, kscale)

    enc_embed = jax.random.normal(next(keys), (input_dim, embed_size), jnp.float32)
    dec_embed = jax.random.normal(next(keys), (output_dim, embed_size), jnp.float32)
    # padding_idx row is zero, as in nn.Embedding(padding_idx=...).
    enc_embed = enc_embed.at[pad_idx].set(0.0)
    dec_embed = dec_embed.at[pad_idx].set(0.0)

    def lstm_stack_params(in_size):
        # stored pre-transposed: W_ih (in, 4H), W_hh (H, 4H); b = b_ih + b_hh.
        w_ih, w_hh, bias = [], [], []
        for layer in range(num_layers):
            e = in_size if layer == 0 else hidden_size
            w_ih.append(unif((e, 4 * hidden_size)))
            w_hh.append(unif((hidden_size, 4 * hidden_size)))
            bias.append(unif((4 * hidden_size,)) + unif((4 * hidden_size,)))
        return w_ih, w_hh, bias

    enc_w_ih, enc_w_hh, enc_b = lstm_stack_params(embed_size)
    dec_w_ih, dec_w_hh, dec_b = lstm_stack_params(embed_size)

    fc_w = unif((hidden_size, output_dim))            # pre-transposed (H, V)
    fc_b = unif((output_dim,))

    return dict(enc_embed=enc_embed, dec_embed=dec_embed,
                enc_w_ih=enc_w_ih, enc_w_hh=enc_w_hh, enc_b=enc_b,
                dec_w_ih=dec_w_ih, dec_w_hh=dec_w_hh, dec_b=dec_b,
                fc_w=fc_w, fc_b=fc_b,
                hidden_size=hidden_size, num_layers=num_layers)


# ------------------------------ model forward ------------------------------- #

def seq2seq_forward(params, src, tgt, *, time_chunk=16,
                    compute_dtype=jnp.float32):
    """Eval-mode forward (nn.LSTM inter-layer dropout is identity in eval).

    compute_dtype: dtype of the MXU operands.  Use jnp.bfloat16 on v6e/v7x for
    2x MXU throughput and halved weight HBM traffic; accumulation and all
    gate/state elementwise math stay f32 regardless.
    """
    B = src.shape[0]
    H = params["hidden_size"]
    L = params["num_layers"]
    Hp = _round_up(H, 128)                 # lane-dense gate slices & stores
    Bp = _round_up(max(B, 8), 8)           # sublane-dense state/activation rows

    def prep_stack(w_ih, w_hh, b):
        out = []
        for l in range(L):
            w_ih_p, w_hh_p, b_p = _pad_lstm_layer(
                w_ih[l], w_hh[l], b[l], H, Hp, pad_input_rows=(l > 0))
            out.append((w_ih_p.astype(compute_dtype),
                        w_hh_p.astype(compute_dtype), b_p))
        return out

    enc_w = prep_stack(params["enc_w_ih"], params["enc_w_hh"], params["enc_b"])
    dec_w = prep_stack(params["dec_w_ih"], params["dec_w_hh"], params["dec_b"])

    def embed_to_x2d(tokens, table):
        emb = jnp.take(table, tokens, axis=0)                    # (B, T, E)
        x = jnp.transpose(emb, (1, 0, 2)).astype(jnp.float32)    # (T, B, E)
        t = x.shape[0]
        x = jnp.pad(x, ((0, 0), (0, Bp - B), (0, 0)))            # (T, Bp, E)
        return x.reshape(t * Bp, x.shape[2]), t

    def run_stack(x2d, t, weights, h0, c0, emit_y_last):
        tc = _pick_chunk(t, time_chunk)
        y, hs, cs = x2d, [], []
        for l in range(L):
            emit_y = emit_y_last or (l < L - 1)
            w_ih_p, w_hh_p, b_p = weights[l]
            out = lstm_layer(y, w_ih_p, w_hh_p, b_p, h0[l], c0[l],
                             batch_p=Bp, time_chunk=tc, emit_y=emit_y,
                             compute_dtype=compute_dtype)
            if emit_y:
                y, hn, cn = out
            else:
                (hn, cn), y = out, None
            hs.append(hn)
            cs.append(cn)
        # TODO(synk): training-mode inter-layer dropout of nn.LSTM is not
        #             implemented (identity in eval mode).
        return y, hs, cs

    # ---- encoder: only the final (h, c) per layer are needed downstream ----
    zeros = [jnp.zeros((Bp, Hp), jnp.float32)] * L
    x2d, _ = embed_to_x2d(src, params["enc_embed"])
    _, hs, cs = run_stack(x2d, src.shape[1], enc_w, zeros, zeros,
                          emit_y_last=False)

    # ---- decoder, initialized from the encoder's final states ----
    y2d_in, t_tgt = embed_to_x2d(tgt, params["dec_embed"])
    y2d, _, _ = run_stack(y2d_in, t_tgt, dec_w, hs, cs, emit_y_last=True)

    # ---- output projection (weight-held, lane-dense tiled matmul) ----
    V = params["fc_w"].shape[1]
    fc_w_p = jnp.pad(params["fc_w"], ((0, Hp - H), (0, 0))).astype(compute_dtype)
    logits = linear_tiled(y2d, fc_w_p, params["fc_b"],
                          compute_dtype=compute_dtype)            # (T*Bp, V)
    logits = logits.reshape(t_tgt, Bp, V)[:, :B, :]
    return jnp.transpose(logits, (1, 0, 2))                       # (B, T, V)


# ---------------------------- pure-JAX reference ---------------------------- #

def _ref_lstm_layer(x_tbe, w_ih, w_hh, b, h0, c0):
    H = h0.shape[-1]

    def step(carry, x_t):
        h, c = carry
        gates = x_t @ w_ih + h @ w_hh + b
        i = jax.nn.sigmoid(gates[:, :H])
        f = jax.nn.sigmoid(gates[:, H:2 * H])
        g = jnp.tanh(gates[:, 2 * H:3 * H])
        o = jax.nn.sigmoid(gates[:, 3 * H:])
        c_new = f * c + i * g
        h_new = o * jnp.tanh(c_new)
        return (h_new, c_new), h_new

    (hN, cN), ys = jax.lax.scan(step, (h0, c0), x_tbe)
    return ys, hN, cN


def _ref_forward(params, src, tgt):
    B = src.shape[0]
    H = params["hidden_size"]
    L = params["num_layers"]
    x = jnp.transpose(jnp.take(params["enc_embed"], src, axis=0), (1, 0, 2))
    zeros = jnp.zeros((B, H), jnp.float32)
    hs, cs = [], []
    for l in range(L):
        x, hN, cN = _ref_lstm_layer(x, params["enc_w_ih"][l],
                                    params["enc_w_hh"][l], params["enc_b"][l],
                                    zeros, zeros)
        hs.append(hN)
        cs.append(cN)
    y = jnp.transpose(jnp.take(params["dec_embed"], tgt, axis=0), (1, 0, 2))
    for l in range(L):
        y, _, _ = _ref_lstm_layer(y, params["dec_w_ih"][l],
                                  params["dec_w_hh"][l], params["dec_b"][l],
                                  hs[l], cs[l])
    logits = y @ params["fc_w"] + params["fc_b"]
    return jnp.transpose(logits, (1, 0, 2))


# ----------------------------------- main ----------------------------------- #

if __name__ == "__main__":
    input_dim, output_dim = 20, 22
    embed_size, hidden_size, num_layers, pad_idx = 32, 32, 2, 0
    batch, src_len, tgt_len = 2, 8, 8

    key = jax.random.PRNGKey(0)
    kp, ks, kt = jax.random.split(key, 3)
    params = init_params(kp, input_dim, output_dim, embed_size, hidden_size,
                         num_layers, pad_idx)

    src = jax.random.randint(ks, (batch, src_len), 0, input_dim, dtype=jnp.int32)
    tgt = jax.random.randint(kt, (batch, tgt_len), 0, output_dim, dtype=jnp.int32)

    # f32 operands: directly comparable against the pure-JAX reference.
    # time_chunk=4 -> 2 time chunks per layer (exercises the cross-chunk carry).
    preds = jax.block_until_ready(seq2seq_forward(params, src, tgt, time_chunk=4))
    assert preds.shape == (batch, tgt_len, output_dim), preds.shape

    ref = jax.block_until_ready(_ref_forward(params, src, tgt))
    assert jnp.allclose(preds, ref, atol=1e-4, rtol=1e-4), \
        float(jnp.max(jnp.abs(preds - ref)))

    # bf16 matmul operands (f32 accumulation + f32 gate math): the perf path
    # for v6e/v7x; compared with a looser tolerance against the f32 reference.
    preds_bf16 = jax.block_until_ready(
        seq2seq_forward(params, src, tgt, time_chunk=4,
                        compute_dtype=jnp.bfloat16))
    assert jnp.allclose(preds_bf16, ref, atol=1e-1, rtol=1e-1), \
        float(jnp.max(jnp.abs(preds_bf16 - ref)))

    print("KERNEL_OK")
</pallas_src>

<mosaic_0001>
module attributes {stable_mosaic.version = 11 : i64} {
  func.func @kernel(%arg0: i32, %arg1: memref<32x32xf32, #tpu.memory_space<vmem>>, %arg2: memref<32x512xf32, #tpu.memory_space<vmem>>, %arg3: memref<128x512xf32, #tpu.memory_space<vmem>>, %arg4: memref<1x512xf32, #tpu.memory_space<vmem>>, %arg5: memref<8x128xf32, #tpu.memory_space<vmem>>, %arg6: memref<8x128xf32, #tpu.memory_space<vmem>>, %arg7: memref<32x128xf32, #tpu.memory_space<vmem>>, %arg8: memref<8x128xf32, #tpu.memory_space<vmem>>, %arg9: memref<8x128xf32, #tpu.memory_space<vmem>>, %arg10: memref<32x512xf32, #tpu.memory_space<vmem>>) attributes {dimension_semantics = [#tpu.dimension_semantics<arbitrary>], iteration_bounds = array<i64: 2>, scalar_prefetch = 0 : i64, scratch_operands = 1 : i64, tpu.core_type = #tpu.core_type<tc>, window_params = [{transform_indices = @transform_0, window_bounds = array<i64: 32, 32>}, {pipeline_mode = #tpu.pipeline_mode<synchronous>, transform_indices = @transform_1, window_bounds = array<i64: 32, 512>}, {pipeline_mode = #tpu.pipeline_mode<synchronous>, transform_indices = @transform_2, window_bounds = array<i64: 128, 512>}, {pipeline_mode = #tpu.pipeline_mode<synchronous>, transform_indices = @transform_3, window_bounds = array<i64: 1, 512>}, {pipeline_mode = #tpu.pipeline_mode<synchronous>, transform_indices = @transform_4, window_bounds = array<i64: 8, 128>}, {pipeline_mode = #tpu.pipeline_mode<synchronous>, transform_indices = @transform_5, window_bounds = array<i64: 8, 128>}, {transform_indices = @transform_6, window_bounds = array<i64: 32, 128>}, {pipeline_mode = #tpu.pipeline_mode<synchronous>, transform_indices = @transform_7, window_bounds = array<i64: 8, 128>}, {pipeline_mode = #tpu.pipeline_mode<synchronous>, transform_indices = @transform_8, window_bounds = array<i64: 8, 128>}]} {
    %c0_i32 = arith.constant 0 : i32
    %0 = arith.cmpi eq, %arg0, %c0_i32 : i32
    %1 = arith.extui %0 : i1 to i32
    %c0_i32_0 = arith.constant 0 : i32
    %2 = arith.cmpi ne, %1, %c0_i32_0 : i32
    scf.if %2 {
      %c0_46 = arith.constant 0 : index
      %c0_47 = arith.constant 0 : index
      %147 = vector.load %arg5[%c0_46, %c0_47] : memref<8x128xf32, #tpu.memory_space<vmem>>, vector<8x128xf32>
      %c0_48 = arith.constant 0 : index
      %c0_49 = arith.constant 0 : index
      %148 = vector.load %arg8[%c0_48, %c0_49] : memref<8x128xf32, #tpu.memory_space<vmem>>, vector<8x128xf32>
      tpu.vector_store %arg8[%c0_48, %c0_49], %147 {strides = array<i32>} : memref<8x128xf32, #tpu.memory_space<vmem>>, vector<8x128xf32>,
      %c0_50 = arith.constant 0 : index
      %c0_51 = arith.constant 0 : index
      %149 = vector.load %arg6[%c0_50, %c0_51] : memref<8x128xf32, #tpu.memory_space<vmem>>, vector<8x128xf32>
      %c0_52 = arith.constant 0 : index
      %c0_53 = arith.constant 0 : index
      %150 = vector.load %arg9[%c0_52, %c0_53] : memref<8x128xf32, #tpu.memory_space<vmem>>, vector<8x128xf32>
      tpu.vector_store %arg9[%c0_52, %c0_53], %149 {strides = array<i32>} : memref<8x128xf32, #tpu.memory_space<vmem>>, vector<8x128xf32>,
    } else {
    }
    %c0 = arith.constant 0 : index
    %c0_1 = arith.constant 0 : index
    %3 = vector.load %arg1[%c0, %c0_1] : memref<32x32xf32, #tpu.memory_space<vmem>>, vector<32x32xf32>
    %c0_2 = arith.constant 0 : index
    %c0_3 = arith.constant 0 : index
    %4 = vector.load %arg2[%c0_2, %c0_3] : memref<32x512xf32, #tpu.memory_space<vmem>>, vector<32x512xf32>
    %cst = arith.constant dense<0.000000e+00> : vector<32x512xf32>
    %5 = tpu.matmul %3, %4, %cst {dimension_numbers = #tpu.dot_dimension_numbers<[1], [0], [0], [1], [0, 0, 1, 1], [], []>} : vector<32x32xf32>, vector<32x512xf32>, vector<32x512xf32> -> vector<32x512xf32>
    %c0_4 = arith.constant 0 : index
    %c0_5 = arith.constant 0 : index
    %6 = vector.load %arg4[%c0_4, %c0_5] : memref<1x512xf32, #tpu.memory_space<vmem>>, vector<1x512xf32>
    %7 = vector.broadcast %6 : vector<1x512xf32> to vector<32x512xf32>
    %8 = arith.addf %5, %7 : vector<32x512xf32>
    %c0_6 = arith.constant 0 : index
    %c0_7 = arith.constant 0 : index
    %9 = vector.load %arg10[%c0_6, %c0_7] : memref<32x512xf32, #tpu.memory_space<vmem>>, vector<32x512xf32>
    tpu.vector_store %arg10[%c0_6, %c0_7], %8 {strides = array<i32>} : memref<32x512xf32, #tpu.memory_space<vmem>>, vector<32x512xf32>,
    %c0_8 = arith.constant 0 : index
    %c0_9 = arith.constant 0 : index
    %10 = vector.load %arg3[%c0_8, %c0_9] : memref<128x512xf32, #tpu.memory_space<vmem>>, vector<128x512xf32>
    %c0_10 = arith.constant 0 : index
    %c0_11 = arith.constant 0 : index
    %11 = vector.load %arg8[%c0_10, %c0_11] : memref<8x128xf32, #tpu.memory_space<vmem>>, vector<8x128xf32>
    %c0_12 = arith.constant 0 : index
    %c0_13 = arith.constant 0 : index
    %12 = vector.load %arg9[%c0_12, %c0_13] : memref<8x128xf32, #tpu.memory_space<vmem>>, vector<8x128xf32>
    %c0_i32_14 = arith.constant 0 : i32
    %c8_i32 = arith.constant 8 : i32
    %13 = arith.muli %c0_i32_14, %c8_i32 : i32
    %14 = tpu.assume_multiple %13, 8 : i32
    %15 = arith.index_cast %14 : i32 to index
    %c0_15 = arith.constant 0 : index
    %16 = vector.load %arg10[%15, %c0_15] : memref<32x512xf32, #tpu.memory_space<vmem>>, vector<8x512xf32>
    %cst_16 = arith.constant dense<0.000000e+00> : vector<8x512xf32>
    %17 = tpu.matmul %11, %10, %cst_16 {dimension_numbers = #tpu.dot_dimension_numbers<[1], [0], [0], [1], [0, 0, 1, 1], [], []>} : vector<8x128xf32>, vector<128x512xf32>, vector<8x512xf32> -> vector<8x512xf32>
    %18 = arith.addf %16, %17 : vector<8x512xf32>
    %19 = vector.extract_strided_slice %18 {offsets = [0, 0], sizes = [8, 128], strides = [1, 1]} : vector<8x512xf32> to vector<8x128xf32>
    %20 = arith.negf %19 : vector<8x128xf32>
    %21 = math.exp %20 : vector<8x128xf32>
    %cst_17 = arith.constant 1.000000e+00 : f32
    %22 = vector.broadcast %cst_17 : f32 to vector<8x128xf32>
    %23 = arith.addf %22, %21 : vector<8x128xf32>
    %24 = arith.divf %22, %23 : vector<8x128xf32>
    %25 = vector.extract_strided_slice %18 {offsets = [0, 128], sizes = [8, 128], strides = [1, 1]} : vector<8x512xf32> to vector<8x128xf32>
    %26 = arith.negf %25 : vector<8x128xf32>
    %27 = math.exp %26 : vector<8x128xf32>
    %cst_18 = arith.constant 1.000000e+00 : f32
    %28 = vector.broadcast %cst_18 : f32 to vector<8x128xf32>
    %29 = arith.addf %28, %27 : vector<8x128xf32>
    %30 = arith.divf %28, %29 : vector<8x128xf32>
    %31 = vector.extract_strided_slice %18 {offsets = [0, 256], sizes = [8, 128], strides = [1, 1]} : vector<8x512xf32> to vector<8x128xf32>
    %32 = math.tanh %31 : vector<8x128xf32>
    %33 = vector.extract_strided_slice %18 {offsets = [0, 384], sizes = [8, 128], strides = [1, 1]} : vector<8x512xf32> to vector<8x128xf32>
    %34 = arith.negf %33 : vector<8x128xf32>
    %35 = math.exp %34 : vector<8x128xf32>
    %cst_19 = arith.constant 1.000000e+00 : f32
    %36 = vector.broadcast %cst_19 : f32 to vector<8x128xf32>
    %37 = arith.addf %36, %35 : vector<8x128xf32>
    %38 = arith.divf %36, %37 : vector<8x128xf32>
    %39 = arith.mulf %30, %12 : vector<8x128xf32>
    %40 = arith.mulf %24, %32 : vector<8x128xf32>
    %41 = arith.addf %39, %40 : vector<8x128xf32>
    %42 = math.tanh %41 : vector<8x128xf32>
    %43 = arith.mulf %38, %42 : vector<8x128xf32>
    %44 = arith.index_cast %14 : i32 to index
    %c0_20 = arith.constant 0 : index
    %45 = vector.load %arg7[%44, %c0_20] : memref<32x128xf32, #tpu.memory_space<vmem>>, vector<8x128xf32>
    tpu.vector_store %arg7[%44, %c0_20], %43 {strides = array<i32>} : memref<32x128xf32, #tpu.memory_space<vmem>>, vector<8x128xf32>,
    %c1_i32 = arith.constant 1 : i32
    %c8_i32_21 = arith.constant 8 : i32
    %46 = arith.muli %c1_i32, %c8_i32_21 : i32
    %47 = tpu.assume_multiple %46, 8 : i32
    %48 = arith.index_cast %47 : i32 to index
    %c0_22 = arith.constant 0 : index
    %49 = vector.load %arg10[%48, %c0_22] : memref<32x512xf32, #tpu.memory_space<vmem>>, vector<8x512xf32>
    %cst_23 = arith.constant dense<0.000000e+00> : vector<8x512xf32>
    %50 = tpu.matmul %43, %10, %cst_23 {dimension_numbers = #tpu.dot_dimension_numbers<[1], [0], [0], [1], [0, 0, 1, 1], [], []>} : vector<8x128xf32>, vector<128x512xf32>, vector<8x512xf32> -> vector<8x512xf32>
    %51 = arith.addf %49, %50 : vector<8x512xf32>
    %52 = vector.extract_strided_slice %51 {offsets = [0, 0], sizes = [8, 128], strides = [1, 1]} : vector<8x512xf32> to vector<8x128xf32>
    %53 = arith.negf %52 : vector<8x128xf32>
    %54 = math.exp %53 : vector<8x128xf32>
    %cst_24 = arith.constant 1.000000e+00 : f32
    %55 = vector.broadcast %cst_24 : f32 to vector<8x128xf32>
    %56 = arith.addf %55, %54 : vector<8x128xf32>
    %57 = arith.divf %55, %56 : vector<8x128xf32>
    %58 = vector.extract_strided_slice %51 {offsets = [0, 128], sizes = [8, 128], strides = [1, 1]} : vector<8x512xf32> to vector<8x128xf32>
    %59 = arith.negf %58 : vector<8x128xf32>
    %60 = math.exp %59 : vector<8x128xf32>
    %cst_25 = arith.constant 1.000000e+00 : f32
    %61 = vector.broadcast %cst_25 : f32 to vector<8x128xf32>
    %62 = arith.addf %61, %60 : vector<8x128xf32>
    %63 = arith.divf %61, %62 : vector<8x128xf32>
    %64 = vector.extract_strided_slice %51 {offsets = [0, 256], sizes = [8, 128], strides = [1, 1]} : vector<8x512xf32> to vector<8x128xf32>
    %65 = math.tanh %64 : vector<8x128xf32>
    %66 = vector.extract_strided_slice %51 {offsets = [0, 384], sizes = [8, 128], strides = [1, 1]} : vector<8x512xf32> to vector<8x128xf32>
    %67 = arith.negf %66 : vector<8x128xf32>
    %68 = math.exp %67 : vector<8x128xf32>
    %cst_26 = arith.constant 1.000000e+00 : f32
    %69 = vector.broadcast %cst_26 : f32 to vector<8x128xf32>
    %70 = arith.addf %69, %68 : vector<8x128xf32>
    %71 = arith.divf %69, %70 : vector<8x128xf32>
    %72 = arith.mulf %63, %41 : vector<8x128xf32>
    %73 = arith.mulf %57, %65 : vector<8x128xf32>
    %74 = arith.addf %72, %73 : vector<8x128xf32>
    %75 = math.tanh %74 : vector<8x128xf32>
    %76 = arith.mulf %71, %75 : vector<8x128xf32>
    %77 = arith.index_cast %47 : i32 to index
    %c0_27 = arith.constant 0 : index
    %78 = vector.load %arg7[%77, %c0_27] : memref<32x128xf32, #tpu.memory_space<vmem>>, vector<8x128xf32>
    tpu.vector_store %arg7[%77, %c0_27], %76 {strides = array<i32>} : memref<32x128xf32, #tpu.memory_space<vmem>>, vector<8x128xf32>,
    %c2_i32 = arith.constant 2 : i32
    %c8_i32_28 = arith.constant 8 : i32
    %79 = arith.muli %c2_i32, %c8_i32_28 : i32
    %80 = tpu.assume_multiple %79, 8 : i32
    %81 = arith.index_cast %80 : i32 to index
    %c0_29 = arith.constant 0 : index
    %82 = vector.load %arg10[%81, %c0_29] : memref<32x512xf32, #tpu.memory_space<vmem>>, vector<8x512xf32>
    %cst_30 = arith.constant dense<0.000000e+00> : vector<8x512xf32>
    %83 = tpu.matmul %76, %10, %cst_30 {dimension_numbers = #tpu.dot_dimension_numbers<[1], [0], [0], [1], [0, 0, 1, 1], [], []>} : vector<8x128xf32>, vector<128x512xf32>, vector<8x512xf32> -> vector<8x512xf32>
    %84 = arith.addf %82, %83 : vector<8x512xf32>
    %85 = vector.extract_strided_slice %84 {offsets = [0, 0], sizes = [8, 128], strides = [1, 1]} : vector<8x512xf32> to vector<8x128xf32>
    %86 = arith.negf %85 : vector<8x128xf32>
    %87 = math.exp %86 : vector<8x128xf32>
    %cst_31 = arith.constant 1.000000e+00 : f32
    %88 = vector.broadcast %cst_31 : f32 to vector<8x128xf32>
    %89 = arith.addf %88, %87 : vector<8x128xf32>
    %90 = arith.divf %88, %89 : vector<8x128xf32>
    %91 = vector.extract_strided_slice %84 {offsets = [0, 128], sizes = [8, 128], strides = [1, 1]} : vector<8x512xf32> to vector<8x128xf32>
    %92 = arith.negf %91 : vector<8x128xf32>
    %93 = math.exp %92 : vector<8x128xf32>
    %cst_32 = arith.constant 1.000000e+00 : f32
    %94 = vector.broadcast %cst_32 : f32 to vector<8x128xf32>
    %95 = arith.addf %94, %93 : vector<8x128xf32>
    %96 = arith.divf %94, %95 : vector<8x128xf32>
    %97 = vector.extract_strided_slice %84 {offsets = [0, 256], sizes = [8, 128], strides = [1, 1]} : vector<8x512xf32> to vector<8x128xf32>
    %98 = math.tanh %97 : vector<8x128xf32>
    %99 = vector.extract_strided_slice %84 {offsets = [0, 384], sizes = [8, 128], strides = [1, 1]} : vector<8x512xf32> to vector<8x128xf32>
    %100 = arith.negf %99 : vector<8x128xf32>
    %101 = math.exp %100 : vector<8x128xf32>
    %cst_33 = arith.constant 1.000000e+00 : f32
    %102 = vector.broadcast %cst_33 : f32 to vector<8x128xf32>
    %103 = arith.addf %102, %101 : vector<8x128xf32>
    %104 = arith.divf %102, %103 : vector<8x128xf32>
    %105 = arith.mulf %96, %74 : vector<8x128xf32>
    %106 = arith.mulf %90, %98 : vector<8x128xf32>
    %107 = arith.addf %105, %106 : vector<8x128xf32>
    %108 = math.tanh %107 : vector<8x128xf32>
    %109 = arith.mulf %104, %108 : vector<8x128xf32>
    %110 = arith.index_cast %80 : i32 to index
    %c0_34 = arith.constant 0 : index
    %111 = vector.load %arg7[%110, %c0_34] : memref<32x128xf32, #tpu.memory_space<vmem>>, vector<8x128xf32>
    tpu.vector_store %arg7[%110, %c0_34], %109 {strides = array<i32>} : memref<32x128xf32, #tpu.memory_space<vmem>>, vector<8x128xf32>,
    %c3_i32 = arith.constant 3 : i32
    %c8_i32_35 = arith.constant 8 : i32
    %112 = arith.muli %c3_i32, %c8_i32_35 : i32
    %113 = tpu.assume_multiple %112, 8 : i32
    %114 = arith.index_cast %113 : i32 to index
    %c0_36 = arith.constant 0 : index
    %115 = vector.load %arg10[%114, %c0_36] : memref<32x512xf32, #tpu.memory_space<vmem>>, vector<8x512xf32>
    %cst_37 = arith.constant dense<0.000000e+00> : vector<8x512xf32>
    %116 = tpu.matmul %109, %10, %cst_37 {dimension_numbers = #tpu.dot_dimension_numbers<[1], [0], [0], [1], [0, 0, 1, 1], [], []>} : vector<8x128xf32>, vector<128x512xf32>, vector<8x512xf32> -> vector<8x512xf32>
    %117 = arith.addf %115, %116 : vector<8x512xf32>
    %118 = vector.extract_strided_slice %117 {offsets = [0, 0], sizes = [8, 128], strides = [1, 1]} : vector<8x512xf32> to vector<8x128xf32>
    %119 = arith.negf %118 : vector<8x128xf32>
    %120 = math.exp %119 : vector<8x128xf32>
    %cst_38 = arith.constant 1.000000e+00 : f32
    %121 = vector.broadcast %cst_38 : f32 to vector<8x128xf32>
    %122 = arith.addf %121, %120 : vector<8x128xf32>
    %123 = arith.divf %121, %122 : vector<8x128xf32>
    %124 = vector.extract_strided_slice %117 {offsets = [0, 128], sizes = [8, 128], strides = [1, 1]} : vector<8x512xf32> to vector<8x128xf32>
    %125 = arith.negf %124 : vector<8x128xf32>
    %126 = math.exp %125 : vector<8x128xf32>
    %cst_39 = arith.constant 1.000000e+00 : f32
    %127 = vector.broadcast %cst_39 : f32 to vector<8x128xf32>
    %128 = arith.addf %127, %126 : vector<8x128xf32>
    %129 = arith.divf %127, %128 : vector<8x128xf32>
    %130 = vector.extract_strided_slice %117 {offsets = [0, 256], sizes = [8, 128], strides = [1, 1]} : vector<8x512xf32> to vector<8x128xf32>
    %131 = math.tanh %130 : vector<8x128xf32>
    %132 = vector.extract_strided_slice %117 {offsets = [0, 384], sizes = [8, 128], strides = [1, 1]} : vector<8x512xf32> to vector<8x128xf32>
    %133 = arith.negf %132 : vector<8x128xf32>
    %134 = math.exp %133 : vector<8x128xf32>
    %cst_40 = arith.constant 1.000000e+00 : f32
    %135 = vector.broadcast %cst_40 : f32 to vector<8x128xf32>
    %136 = arith.addf %135, %134 : vector<8x128xf32>
    %137 = arith.divf %135, %136 : vector<8x128xf32>
    %138 = arith.mulf %129, %107 : vector<8x128xf32>
    %139 = arith.mulf %123, %131 : vector<8x128xf32>
    %140 = arith.addf %138, %139 : vector<8x128xf32>
    %141 = math.tanh %140 : vector<8x128xf32>
    %142 = arith.mulf %137, %141 : vector<8x128xf32>
    %143 = arith.index_cast %113 : i32 to index
    %c0_41 = arith.constant 0 : index
    %144 = vector.load %arg7[%143, %c0_41] : memref<32x128xf32, #tpu.memory_space<vmem>>, vector<8x128xf32>
    tpu.vector_store %arg7[%143, %c0_41], %142 {strides = array<i32>} : memref<32x128xf32, #tpu.memory_space<vmem>>, vector<8x128xf32>,
    %c4_i32 = arith.constant 4 : i32
    %c0_42 = arith.constant 0 : index
    %c0_43 = arith.constant 0 : index
    %145 = vector.load %arg8[%c0_42, %c0_43] : memref<8x128xf32, #tpu.memory_space<vmem>>, vector<8x128xf32>
    tpu.vector_store %arg8[%c0_42, %c0_43], %142 {strides = array<i32>} : memref<8x128xf32, #tpu.memory_space<vmem>>, vector<8x128xf32>,
    %c0_44 = arith.constant 0 : index
    %c0_45 = arith.constant 0 : index
    %146 = vector.load %arg9[%c0_44, %c0_45] : memref<8x128xf32, #tpu.memory_space<vmem>>, vector<8x128xf32>
    tpu.vector_store %arg9[%c0_44, %c0_45], %140 {strides = array<i32>} : memref<8x128xf32, #tpu.memory_space<vmem>>, vector<8x128xf32>,
    return
  }
  func.func @transform_0(%arg0: i32) -> (i32, i32) {
    %c0_i32 = arith.constant 0 : i32
    %c0_i32_0 = arith.constant 0 : i32
    return %arg0, %c0_i32 : i32, i32
  }
  func.func @transform_1(%arg0: i32) -> (i32, i32) {
    %c0_i32 = arith.constant 0 : i32
    %c0_i32_0 = arith.constant 0 : i32
    %c0_i32_1 = arith.constant 0 : i32
    return %c0_i32, %c0_i32_0 : i32, i32
  }
  func.func @transform_2(%arg0: i32) -> (i32, i32) {
    %c0_i32 = arith.constant 0 : i32
    %c0_i32_0 = arith.constant 0 : i32
    %c0_i32_1 = arith.constant 0 : i32
    return %c0_i32, %c0_i32_0 : i32, i32
  }
  func.func @transform_3(%arg0: i32) -> (i32, i32) {
    %c0_i32 = arith.constant 0 : i32
    %c0_i32_0 = arith.constant 0 : i32
    %c0_i32_1 = arith.constant 0 : i32
    return %c0_i32, %c0_i32_0 : i32, i32
  }
  func.func @transform_4(%arg0: i32) -> (i32, i32) {
    %c0_i32 = arith.constant 0 : i32
    %c0_i32_0 = arith.constant 0 : i32
    %c0_i32_1 = arith.constant 0 : i32
    return %c0_i32, %c0_i32_0 : i32, i32
  }
  func.func @transform_5(%arg0: i32) -> (i32, i32) {
    %c0_i32 = arith.constant 0 : i32
    %c0_i32_0 = arith.constant 0 : i32
    %c0_i32_1 = arith.constant 0 : i32
    return %c0_i32, %c0_i32_0 : i32, i32
  }
  func.func @transform_6(%arg0: i32) -> (i32, i32) {
    %c0_i32 = arith.constant 0 : i32
    %c0_i32_0 = arith.constant 0 : i32
    return %arg0, %c0_i32 : i32, i32
  }
  func.func @transform_7(%arg0: i32) -> (i32, i32) {
    %c0_i32 = arith.constant 0 : i32
    %c0_i32_0 = arith.constant 0 : i32
    %c0_i32_1 = arith.constant 0 : i32
    return %c0_i32, %c0_i32_0 : i32, i32
  }
  func.func @transform_8(%arg0: i32) -> (i32, i32) {
    %c0_i32 = arith.constant 0 : i32
    %c0_i32_0 = arith.constant 0 : i32
    %c0_i32_1 = arith.constant 0 : i32
    return %c0_i32, %c0_i32_0 : i32, i32
  }
}

</mosaic_0001>

<llo_original>
// kernel: tpu_custom_call.1
$region0: #{tpu_custom_call.1}
  #allocation0 [shape = 'u32[]', space=smem, size = 0x4, offset = 0x4, fixed_abs, tag = 'smem constant byte address 0x4 - core index']
  #allocation1 [shape = 'u32[144,128]{1,0:T(1,128)}', space=vmem, size = 0x12000, scoped, tag = 'internal scratch']
  #allocation2 [shape = 'f32[32,512]{1,0:T(8,128)}', space=vmem, size = 0x10000, scoped, tag = 'scratch operand']
  %s0 = inlined_call_operand.hbm [shape: f32[64,32], index: 0, kind: input, shape index: {}]
  %s1 = inlined_call_operand.hbm [shape: f32[32,512], index: 1, kind: input, shape index: {}]
  %s2 = inlined_call_operand.hbm [shape: f32[128,512], index: 2, kind: input, shape index: {}]
  %s3 = inlined_call_operand.hbm [shape: f32[1,512], index: 3, kind: input, shape index: {}]
  %s4 = inlined_call_operand.hbm [shape: f32[8,128], index: 4, kind: input, shape index: {}]
  %s5 = inlined_call_operand.hbm [shape: f32[8,128], index: 5, kind: input, shape index: {}]
  %s6 = inlined_call_operand.hbm [shape: f32[64,128], index: 6, kind: output, shape index: {0}]
  %s7 = inlined_call_operand.hbm [shape: f32[8,128], index: 7, kind: output, shape index: {1}]
  %s8 = inlined_call_operand.hbm [shape: f32[8,128], index: 8, kind: output, shape index: {2}]
  %9 = xla_tuple %s6, %s7, %s8
  %s10 = sld [smem:[#allocation0]]
  $region101: #{tpu_custom_call.1} parent=0
    _
  %s12 = ssub.s32 1, %s10
  %s13 = scalar_select 0, %s12, %s10
  $region1: #{tpu_custom_call.1} parent=0
    #allocation3 [shape = 'u8[32768]{0}', space=vmem, size = 0x8000, scoped, tag = 'input window, operand 0']
    #allocation4 [shape = 's32[2]{0}', space=sflag, size = 0x8, scoped, tag = 'scoped memory for tpu_custom_call.1']
    #allocation5 [shape = 's32[2]{0}', space=sflag, size = 0x8, scoped, tag = 'scoped memory for tpu_custom_call.1']
    #allocation6 [shape = 'u8[65536]{0}', space=vmem, size = 0x10000, scoped, tag = 'input window, operand 1, single buffered']
    #allocation7 [shape = 's32[1]{0}', space=sflag, size = 0x4, scoped, tag = 'scoped memory for tpu_custom_call.1']
    #allocation8 [shape = 'u8[262144]{0}', space=vmem, size = 0x40000, scoped, tag = 'input window, operand 2, single buffered']
    #allocation9 [shape = 'u8[2048]{0}', space=vmem, size = 0x800, scoped, tag = 'input window, operand 3, single buffered']
    #allocation10 [shape = 's32[1]{0}', space=sflag, size = 0x4, scoped, tag = 'scoped memory for tpu_custom_call.1']
    #allocation11 [shape = 'u8[4096]{0}', space=vmem, size = 0x1000, scoped, tag = 'input window, operand 4, single buffered']
    #allocation12 [shape = 'u8[4096]{0}', space=vmem, size = 0x1000, scoped, tag = 'input window, operand 5, single buffered']
    #allocation13 [shape = 's32[1]{0}', space=sflag, size = 0x4, scoped, tag = 'scoped memory for tpu_custom_call.1']
    #allocation14 [shape = 'u8[32768]{0}', space=vmem, size = 0x8000, scoped, tag = 'output window, operand 0']
    #allocation15 [shape = 'u8[4096]{0}', space=vmem, size = 0x1000, scoped, tag = 'output window, operand 1, single buffered']
    #allocation16 [shape = 's32[1]{0}', space=sflag, size = 0x4, scoped, tag = 'scoped memory for tpu_custom_call.1']
    #allocation17 [shape = 'u8[4096]{0}', space=vmem, size = 0x1000, scoped, tag = 'output window, operand 2, single buffered']
    %14 = vsyncpa [#allocation4], 0
    %s15 = scalar_lea.sflag [#allocation4], 1
    %16 = vsyncpa %s15, 0
    %17 = vsyncpa [#allocation7], 0
    %18 = vsyncpa [#allocation10], 0
    %19 = vsyncpa [#allocation13], 0
    %20 = vsyncpa [#allocation5], 0
    %s21 = scalar_lea.sflag [#allocation5], 1
    %22 = vsyncpa %s21, 0
    %23 = vsyncpa [#allocation16], 0
    loop: start=0, step=1, limit=4
    $region2: #{tpu_custom_call.1} parent=1 // loop_pre_header
      _
    $region3: #{tpu_custom_call.1} parent=1 // loop_header
      %s25 = sphi 0, %s29
      %p26 = scmp.ge.s32.totalorder %s25, 4
      %s35 = sphi 0, %s37
      %s38 = sphi 0, %s35
      %s39 = sphi 0, %s38
      %s55 = sphi 0, %s39
      %s59 = sphi 0, %s59
      %s61 = sphi 0, %s59
      %s62 = sphi 0, %s61
      %s76 = sphi 0, %s62
      %s80 = sphi 0, %s80
      %s82 = sphi 0, %s80
      %s83 = sphi 0, %s82
      %s97 = sphi 0, %s83
      %s101 = sphi 0, %s101
      %s103 = sphi 0, %s101
      %s104 = sphi 0, %s103
      %s118 = sphi 0, %s104
      %s122 = sphi 0, %s122
      %s124 = sphi 0, %s122
      %s125 = sphi 0, %s124
      %s139 = sphi 0, %s125
      %s143 = sphi 0, %s143
      %s145 = sphi 0, %s143
      %s146 = sphi 0, %s145
      %s160 = sphi 0, %s146
      %s166 = sphi 0, %s168
      %s169 = sphi 0, %s166
      %s170 = sphi 0, %s169
      %s186 = sphi 0, %s170
      %s190 = sphi 0, %s190
      %s192 = sphi 0, %s190
      %s193 = sphi 0, %s192
      %s207 = sphi 0, %s193
      %s211 = sphi 0, %s211
      %s213 = sphi 0, %s211
      %s214 = sphi 0, %s213
      %s228 = sphi 0, %s214
    $region4: #{tpu_custom_call.1} parent=1 // loop_header_branch
      %28 = sbr.rel (%p26) target = $region8
    $region5: #{tpu_custom_call.1} parent=1 // loop_body
      %s30 = ssub.s32 %s25, 1
      %s31 = ssub.s32 %s25, 2
      %s32 = sadd.s32 %s25, 1
      %s33 = ssub.s32 %s25, %s32
      %p34 = scmp.eq.s32.totalorder %s33, 0
      %s36 = sadd.s32 %s35, 1
      %s37 = scalar_select %p34, %s35, %s36
      %p40 = pneg %p34
      %p41 = scmp.eq.s32.totalorder %s25, 1
      %p42 = por %p40, %p41
      %p43 = scmp.ne.s32.totalorder %s35, %s38
      %p44 = scmp.eq.s32.totalorder %s25, 0
      %p45 = por %p43, %p44
      %p46 = scmp.ne.s32.totalorder %s35, %s38
      %p47 = scmp.eq.s32.totalorder %s30, 1
      %p48 = por %p46, %p47
      %p49 = scmp.ne.s32.totalorder %s38, %s39
      %p50 = scmp.eq.s32.totalorder %s30, 0
      %p51 = por %p49, %p50
      %p52 = scmp.ne.s32.totalorder %s38, %s39
      %p53 = scmp.eq.s32.totalorder %s31, 1
      %p54 = por %p52, %p53
      %p56 = scmp.ne.s32.totalorder %s39, %s55
      %p57 = scmp.eq.s32.totalorder %s31, 0
      %p58 = por %p56, %p57
      %s60 = sadd.s32 %s59, 1
      %p63 = scmp.eq.s32.totalorder %s25, 1
      %p64 = scmp.ne.s32.totalorder %s59, %s61
      %p65 = scmp.eq.s32.totalorder %s25, 0
      %p66 = por %p64, %p65
      %p67 = scmp.ne.s32.totalorder %s59, %s61
      %p68 = scmp.eq.s32.totalorder %s30, 1
      %p69 = por %p67, %p68
      %p70 = scmp.ne.s32.totalorder %s61, %s62
      %p71 = scmp.eq.s32.totalorder %s30, 0
      %p72 = por %p70, %p71
      %p73 = scmp.ne.s32.totalorder %s61, %s62
      %p74 = scmp.eq.s32.totalorder %s31, 1
      %p75 = por %p73, %p74
      %p77 = scmp.ne.s32.totalorder %s62, %s76
      %p78 = scmp.eq.s32.totalorder %s31, 0
      %p79 = por %p77, %p78
      %s81 = sadd.s32 %s80, 1
      %p84 = scmp.eq.s32.totalorder %s25, 1
      %p85 = scmp.ne.s32.totalorder %s80, %s82
      %p86 = scmp.eq.s32.totalorder %s25, 0
      %p87 = por %p85, %p86
      %p88 = scmp.ne.s32.totalorder %s80, %s82
      %p89 = scmp.eq.s32.totalorder %s30, 1
      %p90 = por %p88, %p89
      %p91 = scmp.ne.s32.totalorder %s82, %s83
      %p92 = scmp.eq.s32.totalorder %s30, 0
      %p93 = por %p91, %p92
      %p94 = scmp.ne.s32.totalorder %s82, %s83
      %p95 = scmp.eq.s32.totalorder %s31, 1
      %p96 = por %p94, %p95
      %p98 = scmp.ne.s32.totalorder %s83, %s97
      %p99 = scmp.eq.s32.totalorder %s31, 0
      %p100 = por %p98, %p99
      %s102 = sadd.s32 %s101, 1
      %p105 = scmp.eq.s32.totalorder %s25, 1
      %p106 = scmp.ne.s32.totalorder %s101, %s103
      %p107 = scmp.eq.s32.totalorder %s25, 0
      %p108 = por %p106, %p107
      %p109 = scmp.ne.s32.totalorder %s101, %s103
      %p110 = scmp.eq.s32.totalorder %s30, 1
      %p111 = por %p109, %p110
      %p112 = scmp.ne.s32.totalorder %s103, %s104
      %p113 = scmp.eq.s32.totalorder %s30, 0
      %p114 = por %p112, %p113
      %p115 = scmp.ne.s32.totalorder %s103, %s104
      %p116 = scmp.eq.s32.totalorder %s31, 1
      %p117 = por %p115, %p116
      %p119 = scmp.ne.s32.totalorder %s104, %s118
      %p120 = scmp.eq.s32.totalorder %s31, 0
      %p121 = por %p119, %p120
      %s123 = sadd.s32 %s122, 1
      %p126 = scmp.eq.s32.totalorder %s25, 1
      %p127 = scmp.ne.s32.totalorder %s122, %s124
      %p128 = scmp.eq.s32.totalorder %s25, 0
      %p129 = por %p127, %p128
      %p130 = scmp.ne.s32.totalorder %s122, %s124
      %p131 = scmp.eq.s32.totalorder %s30, 1
      %p132 = por %p130, %p131
      %p133 = scmp.ne.s32.totalorder %s124, %s125
      %p134 = scmp.eq.s32.totalorder %s30, 0
      %p135 = por %p133, %p134
      %p136 = scmp.ne.s32.totalorder %s124, %s125
      %p137 = scmp.eq.s32.totalorder %s31, 1
      %p138 = por %p136, %p137
      %p140 = scmp.ne.s32.totalorder %s125, %s139
      %p141 = scmp.eq.s32.totalorder %s31, 0
      %p142 = por %p140, %p141
      %s144 = sadd.s32 %s143, 1
      %p147 = scmp.eq.s32.totalorder %s25, 1
      %p148 = scmp.ne.s32.totalorder %s143, %s145
      %p149 = scmp.eq.s32.totalorder %s25, 0
      %p150 = por %p148, %p149
      %p151 = scmp.ne.s32.totalorder %s143, %s145
      %p152 = scmp.eq.s32.totalorder %s30, 1
      %p153 = por %p151, %p152
      %p154 = scmp.ne.s32.totalorder %s145, %s146
      %p155 = scmp.eq.s32.totalorder %s30, 0
      %p156 = por %p154, %p155
      %p157 = scmp.ne.s32.totalorder %s145, %s146
      %p158 = scmp.eq.s32.totalorder %s31, 1
      %p159 = por %p157, %p158
      %p161 = scmp.ne.s32.totalorder %s146, %s160
      %p162 = scmp.eq.s32.totalorder %s31, 0
      %p163 = por %p161, %p162
      %s164 = ssub.s32 %s25, %s32
      %p165 = scmp.eq.s32.totalorder %s164, 0
      %s167 = sadd.s32 %s166, 1
      %s168 = scalar_select %p165, %s166, %s167
      %p171 = pneg %p165
      %p172 = scmp.eq.s32.totalorder %s25, 1
      %p173 = por %p171, %p172
      %p174 = scmp.ne.s32.totalorder %s166, %s169
      %p175 = scmp.eq.s32.totalorder %s25, 0
      %p176 = por %p174, %p175
      %p177 = scmp.ne.s32.totalorder %s166, %s169
      %p178 = scmp.eq.s32.totalorder %s30, 1
      %p179 = por %p177, %p178
      %p180 = scmp.ne.s32.totalorder %s169, %s170
      %p181 = scmp.eq.s32.totalorder %s30, 0
      %p182 = por %p180, %p181
      %p183 = scmp.ne.s32.totalorder %s169, %s170
      %p184 = scmp.eq.s32.totalorder %s31, 1
      %p185 = por %p183, %p184
      %p187 = scmp.ne.s32.totalorder %s170, %s186
      %p188 = scmp.eq.s32.totalorder %s31, 0
      %p189 = por %p187, %p188
      %s191 = sadd.s32 %s190, 1
      %p194 = scmp.eq.s32.totalorder %s25, 1
      %p195 = scmp.ne.s32.totalorder %s190, %s192
      %p196 = scmp.eq.s32.totalorder %s25, 0
      %p197 = por %p195, %p196
      %p198 = scmp.ne.s32.totalorder %s190, %s192
      %p199 = scmp.eq.s32.totalorder %s30, 1
      %p200 = por %p198, %p199
      %p201 = scmp.ne.s32.totalorder %s192, %s193
      %p202 = scmp.eq.s32.totalorder %s30, 0
      %p203 = por %p201, %p202
      %p204 = scmp.ne.s32.totalorder %s192, %s193
      %p205 = scmp.eq.s32.totalorder %s31, 1
      %p206 = por %p204, %p205
      %p208 = scmp.ne.s32.totalorder %s193, %s207
      %p209 = scmp.eq.s32.totalorder %s31, 0
      %p210 = por %p208, %p209
      %s212 = sadd.s32 %s211, 1
      %p215 = scmp.eq.s32.totalorder %s25, 1
      %p216 = scmp.ne.s32.totalorder %s211, %s213
      %p217 = scmp.eq.s32.totalorder %s25, 0
      %p218 = por %p216, %p217
      %p219 = scmp.ne.s32.totalorder %s211, %s213
      %p220 = scmp.eq.s32.totalorder %s30, 1
      %p221 = por %p219, %p220
      %p222 = scmp.ne.s32.totalorder %s213, %s214
      %p223 = scmp.eq.s32.totalorder %s30, 0
      %p224 = por %p222, %p223
      %p225 = scmp.ne.s32.totalorder %s213, %s214
      %p226 = scmp.eq.s32.totalorder %s31, 1
      %p227 = por %p225, %p226
      %p229 = scmp.ne.s32.totalorder %s214, %s228
      %p230 = scmp.eq.s32.totalorder %s31, 0
      %p231 = por %p229, %p230
      %p232 = scmp.le.s32.totalorder 1, %s25
      %p233 = scmp.lt.s32.totalorder %s25, 3
      %p234 = pnand %p232, %p233
      %p235 = pneg %p234
      // Predicated region
      $region9: #{tpu_custom_call.1} parent=5 // pred_check
        _
      $region10: #{tpu_custom_call.1} parent=5 // pred_check_branch
        %237 = sbr.rel (%p234) target = $region12
      $region11: #{tpu_custom_call.1} parent=5 // pred_region
        %s238 = ssub.s32 %s25, 1
        // Predicated region
        $region13: #{tpu_custom_call.1} parent=11 // pred_check
          %p239 = pneg %p72
        $region14: #{tpu_custom_call.1} parent=11 // pred_check_branch
          %241 = sbr.rel (%p239) target = $region16
        $region15: #{tpu_custom_call.1} parent=11 // pred_region
          %s243 = ssub.s32 2048, 2048
          %244 = vsyncadd [#allocation7], %s243
          %s245 = sshll.u32 [#allocation6], 4
          %s246 = int_to_ptr.vmem [resolvable:$true] %s245
          %251 = dma.hbm_to_vmem [thread:$0]  %s1, 2048, %s246, [#allocation7], 512, 512, 32
        $region16: #{tpu_custom_call.1} parent=11 // pred_fallthru
          _
        // Predicated region
        $region17: #{tpu_custom_call.1} parent=11 // pred_check
          %p252 = pneg %p93
        $region18: #{tpu_custom_call.1} parent=11 // pred_check_branch
          %254 = sbr.rel (%p252) target = $region20
        $region19: #{tpu_custom_call.1} parent=11 // pred_region
          %s256 = ssub.s32 8192, 8192
          %257 = vsyncadd [#allocation7], %s256
          %s258 = sshll.u32 [#allocation8], 4
          %s259 = int_to_ptr.vmem [resolvable:$true] %s258
          %264 = dma.hbm_to_vmem [thread:$0]  %s2, 8192, %s259, [#allocation7], 512, 512, 32
        $region20: #{tpu_custom_call.1} parent=11 // pred_fallthru
          _
        // Predicated region
        $region21: #{tpu_custom_call.1} parent=11 // pred_check
          %p265 = pneg %p114
        $region22: #{tpu_custom_call.1} parent=11 // pred_check_branch
          %267 = sbr.rel (%p265) target = $region24
        $region23: #{tpu_custom_call.1} parent=11 // pred_region
          %s269 = ssub.s32 64, 64
          %270 = vsyncadd [#allocation10], %s269
          %s272 = sshll.u32 [#allocation9], 4
          %s273 = int_to_ptr.vmem [resolvable:$true] %s272
          %275 = dma.hbm_to_vmem [thread:$0]  %s3, 64, %s273, [#allocation10]
        $region24: #{tpu_custom_call.1} parent=11 // pred_fallthru
          _
        // Predicated region
        $region25: #{tpu_custom_call.1} parent=11 // pred_check
          %p276 = pneg %p135
        $region26: #{tpu_custom_call.1} parent=11 // pred_check_branch
          %278 = sbr.rel (%p276) target = $region28
        $region27: #{tpu_custom_call.1} parent=11 // pred_region
          %s280 = ssub.s32 128, 128
          %281 = vsyncadd [#allocation10], %s280
          %s283 = sshll.u32 [#allocation11], 4
          %s284 = int_to_ptr.vmem [resolvable:$true] %s283
          %286 = dma.hbm_to_vmem [thread:$0]  %s4, 128, %s284, [#allocation10]
        $region28: #{tpu_custom_call.1} parent=11 // pred_fallthru
          _
        // Predicated region
        $region29: #{tpu_custom_call.1} parent=11 // pred_check
          %p287 = pneg %p156
        $region30: #{tpu_custom_call.1} parent=11 // pred_check_branch
          %289 = sbr.rel (%p287) target = $region32
        $region31: #{tpu_custom_call.1} parent=11 // pred_region
          %s291 = ssub.s32 128, 128
          %292 = vsyncadd [#allocation13], %s291
          %s294 = sshll.u32 [#allocation12], 4
          %s295 = int_to_ptr.vmem [resolvable:$true] %s294
          %297 = dma.hbm_to_vmem [thread:$0]  %s5, 128, %s295, [#allocation13]
        $region32: #{tpu_custom_call.1} parent=11 // pred_fallthru
          _
      $region12: #{tpu_custom_call.1} parent=5 // pred_fallthru
        _
      %p298 = scmp.lt.s32.totalorder %s25, 2
      // Predicated region
      $region33: #{tpu_custom_call.1} parent=5 // pred_check
        %p299 = pneg %p298
      $region34: #{tpu_custom_call.1} parent=5 // pred_check_branch
        %301 = sbr.rel (%p299) target = $region36
      $region35: #{tpu_custom_call.1} parent=5 // pred_region
        // Predicated region
        $region37: #{tpu_custom_call.1} parent=35 // pred_check
          %p302 = pneg %p45
        $region38: #{tpu_custom_call.1} parent=35 // pred_check_branch
          %304 = sbr.rel (%p302) target = $region40
        $region39: #{tpu_custom_call.1} parent=35 // pred_region
          %s305 = sand.u32 %s35, 1
          %s306 = scalar_lea.sflag [#allocation4], %s305
          %s307 = sand.u32 %s35, 1
          %s308 = smul.addr %s307, 32
          %s309 = scalar_lea.vmem [#allocation3], %s308
          %s310 = smul.u32 4, %s25
          %s312 = ssub.s32 512, 512
          %313 = vsyncadd %s306, %s312
          %s314 = smul.addr %s310, 128
          %s315 = scalar_lea.hbm %s0, %s314
          %s316 = sshll.u32 %s309, 4
          %s317 = int_to_ptr.vmem [resolvable:$true] %s316
          %322 = dma.hbm_to_vmem [thread:$0]  %s315, 512, %s317, %s306, 128, 128, 8
        $region40: #{tpu_custom_call.1} parent=35 // pred_fallthru
          _
      $region36: #{tpu_custom_call.1} parent=5 // pred_fallthru
        _
      %p323 = scmp.le.s32.totalorder 1, %s25
      %p324 = scmp.lt.s32.totalorder %s25, 3
      %p325 = pnand %p323, %p324
      %p326 = pneg %p325
      // Predicated region
      $region41: #{tpu_custom_call.1} parent=5 // pred_check
        _
      $region42: #{tpu_custom_call.1} parent=5 // pred_check_branch
        %328 = sbr.rel (%p325) target = $region44
      $region43: #{tpu_custom_call.1} parent=5 // pred_region
        %s329 = ssub.s32 %s25, 1
        %s330 = sand.u32 %s38, 1
        %s331 = scalar_lea.sflag [#allocation4], %s330
        %s332 = sand.u32 %s38, 1
        %s333 = smul.addr %s332, 32
        %s334 = scalar_lea.vmem [#allocation3], %s333
        // Predicated region
        $region45: #{tpu_custom_call.1} parent=43 // pred_check
          %p335 = pneg %p51
        $region46: #{tpu_custom_call.1} parent=43 // pred_check_branch
          %337 = sbr.rel (%p335) target = $region48
        $region47: #{tpu_custom_call.1} parent=43 // pred_region
          %338 = dma.done %s331, 512
        $region48: #{tpu_custom_call.1} parent=43 // pred_fallthru
          _
        // Predicated region
        $region49: #{tpu_custom_call.1} parent=43 // pred_check
          %p339 = pneg %p72
        $region50: #{tpu_custom_call.1} parent=43 // pred_check_branch
          %341 = sbr.rel (%p339) target = $region52
        $region51: #{tpu_custom_call.1} parent=43 // pred_region
          %342 = dma.done [#allocation7], 2048
        $region52: #{tpu_custom_call.1} parent=43 // pred_fallthru
          _
        // Predicated region
        $region53: #{tpu_custom_call.1} parent=43 // pred_check
          %p343 = pneg %p93
        $region54: #{tpu_custom_call.1} parent=43 // pred_check_branch
          %345 = sbr.rel (%p343) target = $region56
        $region55: #{tpu_custom_call.1} parent=43 // pred_region
          %346 = dma.done [#allocation7], 8192
        $region56: #{tpu_custom_call.1} parent=43 // pred_fallthru
          _
        // Predicated region
        $region57: #{tpu_custom_call.1} parent=43 // pred_check
          %p347 = pneg %p114
        $region58: #{tpu_custom_call.1} parent=43 // pred_check_branch
          %349 = sbr.rel (%p347) target = $region60
        $region59: #{tpu_custom_call.1} parent=43 // pred_region
          %350 = dma.done [#allocation10], 64
        $region60: #{tpu_custom_call.1} parent=43 // pred_fallthru
          _
        // Predicated region
        $region61: #{tpu_custom_call.1} parent=43 // pred_check
          %p351 = pneg %p135
        $region62: #{tpu_custom_call.1} parent=43 // pred_check_branch
          %353 = sbr.rel (%p351) target = $region64
        $region63: #{tpu_custom_call.1} parent=43 // pred_region
          %354 = dma.done [#allocation10], 128
        $region64: #{tpu_custom_call.1} parent=43 // pred_fallthru
          _
        // Predicated region
        $region65: #{tpu_custom_call.1} parent=43 // pred_check
          %p355 = pneg %p156
        $region66: #{tpu_custom_call.1} parent=43 // pred_check_branch
          %357 = sbr.rel (%p355) target = $region68
        $region67: #{tpu_custom_call.1} parent=43 // pred_region
          %358 = dma.done [#allocation13], 128
        $region68: #{tpu_custom_call.1} parent=43 // pred_fallthru
          _
        %s359 = sand.u32 %s38, 1
        %s360 = scalar_lea.sflag [#allocation4], %s359
        %s361 = sand.u32 %s38, 1
        %s362 = smul.addr %s361, 32
        %s363 = scalar_lea.vmem [#allocation3], %s362
        %p364 = pneg %p51
        %p365 = pneg %p48
        %p366 = pneg %p72
        %p367 = pneg %p69
        %p368 = pneg %p93
        %p369 = pneg %p90
        %p370 = pneg %p114
        %p371 = pneg %p111
        %p372 = pneg %p135
        %p373 = pneg %p132
        %p374 = pneg %p156
        %p375 = pneg %p153
        %p376 = pneg %p182
        %p377 = pneg %p179
        %s378 = sand.u32 %s169, 1
        %s379 = scalar_lea.sflag [#allocation5], %s378
        %s380 = sand.u32 %s169, 1
        %s381 = smul.addr %s380, 32
        %s382 = scalar_lea.vmem [#allocation14], %s381
        %p383 = pneg %p203
        %p384 = pneg %p200
        %p385 = pneg %p224
        %p386 = pneg %p221
        %s387 = smul.u32 4, %s30
        %s388 = smul.u32 4, %s30
        %p389 = scmp.eq.s32.totalorder %s30, 0
        // Predicated region
        $region69: #{tpu_custom_call.1} parent=43 // pred_check
          %p390 = pneg %p389
        $region70: #{tpu_custom_call.1} parent=43 // pred_check_branch
          %392 = sbr.rel (%p390) target = $region72
        $region71: #{tpu_custom_call.1} parent=43 // pred_region
          %v393 = vld [vmem:[#allocation11] sm:$0xff]
          %394 = vst [vmem:[#allocation15] sm:$0xff] %v393
          %v395 = vld [vmem:[#allocation12] sm:$0xff]
          %396 = vst [vmem:[#allocation17] sm:$0xff] %v395
        $region72: #{tpu_custom_call.1} parent=43 // pred_fallthru
          _
        %v397 = vld [vmem:[%s334] sm:$0xff]
        %v398 = vld [vmem:[%s334 + $0x8] sm:$0xff]
        %v399 = vld [vmem:[%s334 + $0x10] sm:$0xff]
        %v400 = vld [vmem:[%s334 + $0x18] sm:$0xff]
        %v401 = vld [vmem:[#allocation6] sm:$0xff]
        %v402 = vld [vmem:[#allocation6 + $0x8] sm:$0xff]
        %v403 = vld [vmem:[#allocation6 + $0x10] sm:$0xff]
        %v404 = vld [vmem:[#allocation6 + $0x18] sm:$0xff]
        %v405 = vld [vmem:[#allocation6 + $0x20] sm:$0xff]
        %v406 = vld [vmem:[#allocation6 + $0x28] sm:$0xff]
        %v407 = vld [vmem:[#allocation6 + $0x30] sm:$0xff]
        %v408 = vld [vmem:[#allocation6 + $0x38] sm:$0xff]
        %v409 = vld [vmem:[#allocation6 + $0x40] sm:$0xff]
        %v410 = vld [vmem:[#allocation6 + $0x48] sm:$0xff]
        %v411 = vld [vmem:[#allocation6 + $0x50] sm:$0xff]
        %v412 = vld [vmem:[#allocation6 + $0x58] sm:$0xff]
        %v413 = vld [vmem:[#allocation6 + $0x60] sm:$0xff]
        %v414 = vld [vmem:[#allocation6 + $0x68] sm:$0xff]
        %v415 = vld [vmem:[#allocation6 + $0x70] sm:$0xff]
        %v416 = vld [vmem:[#allocation6 + $0x78] sm:$0xff]
        %v417 = vld [vmem:[#allocation9] sm:$0xf]
        %v419 = vlaneseq
        %v420 = vshrl.u32 %v419, 7
        %v421 = vsub.s32 0, %v420
        %v422 = vrot.slane %v417, %v421
        %v423 = vlaneseq
        %v424 = vshrl.u32 %v423, 7
        %v425 = vsub.s32 1, %v424
        %v426 = vrot.slane %v417, %v425
        %v427 = vlaneseq
        %v428 = vshrl.u32 %v427, 7
        %v429 = vsub.s32 2, %v428
        %v430 = vrot.slane %v417, %v429
        %v431 = vlaneseq
        %v432 = vshrl.u32 %v431, 7
        %v433 = vsub.s32 3, %v432
        %v434 = vrot.slane %v417, %v433
        %vm439 = vcmask 261120
        %v441 = vsel %vm439, %v397, 0
        %v444 = vsel %vm439, %v398, 0
        %v447 = vsel %vm439, %v399, 0
        %v450 = vsel %vm439, %v400, 0
        %452 = vmatprep.subr.mxu0 %v402
        %453 = vmatpush1.msra.mxu0 %v401
        %454 = vmatprep.subr.mxu0 %v406
        %455 = vmatpush1.msra.mxu0 %v405
        %456 = vmatprep.subr.mxu0 %v410
        %457 = vmatpush1.msra.mxu0 %v409
        %458 = vmatprep.subr.mxu0 %v414
        %459 = vmatpush1.msra.mxu0 %v413
        %460 = vmatprep.subr.mxu0 0.0
        %461 = vmatpush1.msra.mxu0 0.0
        %462 = vmatprep.subr.mxu0 0.0
        %463 = vmatpush1.msra.mxu0 0.0
        %464 = vmatprep.subr.mxu0 0.0
        %465 = vmatpush1.msra.mxu0 0.0
        %466 = vmatprep.subr.mxu0 0.0
        %467 = vmatpush1.msra.mxu0 0.0
        %468 = vmatprep.subr.mxu0 0.0
        %469 = vmatpush1.msra.mxu0 0.0
        %470 = vmatprep.subr.mxu0 0.0
        %471 = vmatpush1.msra.mxu0 0.0
        %472 = vmatprep.subr.mxu0 0.0
        %473 = vmatpush1.msra.mxu0 0.0
        %474 = vmatprep.subr.mxu0 0.0
        %475 = vmatpush1.msra.mxu0 0.0
        %476 = vmatprep.subr.mxu0 0.0
        %477 = vmatpush1.msra.mxu0 0.0
        %478 = vmatprep.subr.mxu0 0.0
        %479 = vmatpush1.msra.mxu0 0.0
        %480 = vmatprep.subr.mxu0 0.0
        %481 = vmatpush1.msra.mxu0 0.0
        %482 = vmatprep.subr.mxu0 0.0
        %483 = vmatpush1.msra.mxu0 0.0
        %484 = vmatprep.subr.mxu0 0.0
        %485 = vmatpush1.msra.mxu0 0.0
        %486 = vmatprep.subr.mxu0 0.0
        %487 = vmatpush1.msra.mxu0 0.0
        %488 = vmatprep.subr.mxu0 0.0
        %489 = vmatpush1.msra.mxu0 0.0
        %490 = vmatprep.subr.mxu0 0.0
        %491 = vmatpush1.msra.mxu0 0.0
        %492 = vmatprep.subr.mxu0 0.0
        %493 = vmatpush1.msra.mxu0 0.0
        %494 = vmatprep.subr.mxu0 0.0
        %495 = vmatpush1.msra.mxu0 0.0
        %496 = vmatprep.subr.mxu0 0.0
        %497 = vmatpush1.msra.mxu0 0.0
        %498 = vmatprep.subr.mxu0 0.0
        %499 = vmatpush1.msra.mxu0 0.0
        %500 = vmatprep.subr.mxu0 0.0
        %501 = vmatpush1.msra.mxu0 0.0
        %502 = vmatprep.subr.mxu0 0.0
        %503 = vmatpush1.msra.mxu0 0.0
        %504 = vmatprep.subr.mxu0 0.0
        %505 = vmatpush1.msra.mxu0 0.0
        %506 = vmatprep.subr.mxu0 0.0
        %507 = vmatpush1.msra.mxu0 0.0
        %508 = vmatprep.subr.mxu0 0.0
        %509 = vmatpush1.msra.mxu0 0.0
        %510 = vmatprep.subr.mxu0 0.0
        %511 = vmatpush1.msra.mxu0 0.0
        %512 = vmatprep.subr.mxu0 0.0
        %513 = vmatpush1.msra.mxu0 0.0
        %514 = vmatprep.subr.mxu0 0.0
        %515 = vmatpush1.msra.mxu0 0.0
        %516 = vmatprep.mubr.f32.mxu0 0.0
        %517 = vmatmul.mubr.f32.gmra.mrb[0].mxu0 %v441
        %v518 = vpop.f32.mrb[0].mxu0
        %v519 = vadd.f32 %v422, %v518
        %v520 = vpop.f32.mrb[0].mxu0
        %v521 = vadd.f32 %v426, %v520
        %522 = vmatprep.mubr.f32.mxu0 0.0
        %523 = vmatmul.mubr.f32.gmra.mrb[0].mxu0 %v444
        %v524 = vpop.f32.mrb[0].mxu0
        %v525 = vadd.f32 %v422, %v524
        %v526 = vpop.f32.mrb[0].mxu0
        %v527 = vadd.f32 %v426, %v526
        %528 = vmatprep.mubr.f32.mxu0 0.0
        %529 = vmatmul.mubr.f32.gmra.mrb[0].mxu0 %v447
        %v530 = vpop.f32.mrb[0].mxu0
        %v531 = vadd.f32 %v422, %v530
        %v532 = vpop.f32.mrb[0].mxu0
        %v533 = vadd.f32 %v426, %v532
        %534 = vmatprep.mubr.f32.mxu0 0.0
        %535 = vmatmul.mubr.f32.gmra.mrb[0].mxu0 %v450
        %v536 = vpop.f32.mrb[0].mxu0
        %v537 = vadd.f32 %v422, %v536
        %v538 = vpop.f32.mrb[0].mxu0
        %v539 = vadd.f32 %v426, %v538
        %540 = vdwg.mxu0
        %541 = vmatprep.subr.mxu0 %v404
        %542 = vmatpush1.msra.mxu0 %v403
        %543 = vmatprep.subr.mxu0 %v408
        %544 = vmatpush1.msra.mxu0 %v407
        %545 = vmatprep.subr.mxu0 %v412
        %546 = vmatpush1.msra.mxu0 %v411
        %547 = vmatprep.subr.mxu0 %v416
        %548 = vmatpush1.msra.mxu0 %v415
        %549 = vmatprep.subr.mxu0 0.0
        %550 = vmatpush1.msra.mxu0 0.0
        %551 = vmatprep.subr.mxu0 0.0
        %552 = vmatpush1.msra.mxu0 0.0
        %553 = vmatprep.subr.mxu0 0.0
        %554 = vmatpush1.msra.mxu0 0.0
        %555 = vmatprep.subr.mxu0 0.0
        %556 = vmatpush1.msra.mxu0 0.0
        %557 = vmatprep.subr.mxu0 0.0
        %558 = vmatpush1.msra.mxu0 0.0
        %559 = vmatprep.subr.mxu0 0.0
        %560 = vmatpush1.msra.mxu0 0.0
        %561 = vmatprep.subr.mxu0 0.0
        %562 = vmatpush1.msra.mxu0 0.0
        %563 = vmatprep.subr.mxu0 0.0
        %564 = vmatpush1.msra.mxu0 0.0
        %565 = vmatprep.subr.mxu0 0.0
        %566 = vmatpush1.msra.mxu0 0.0
        %567 = vmatprep.subr.mxu0 0.0
        %568 = vmatpush1.msra.mxu0 0.0
        %569 = vmatprep.subr.mxu0 0.0
        %570 = vmatpush1.msra.mxu0 0.0
        %571 = vmatprep.subr.mxu0 0.0
        %572 = vmatpush1.msra.mxu0 0.0
        %573 = vmatprep.subr.mxu0 0.0
        %574 = vmatpush1.msra.mxu0 0.0
        %575 = vmatprep.subr.mxu0 0.0
        %576 = vmatpush1.msra.mxu0 0.0
        %577 = vmatprep.subr.mxu0 0.0
        %578 = vmatpush1.msra.mxu0 0.0
        %579 = vmatprep.subr.mxu0 0.0
        %580 = vmatpush1.msra.mxu0 0.0
        %581 = vmatprep.subr.mxu0 0.0
        %582 = vmatpush1.msra.mxu0 0.0
        %583 = vmatprep.subr.mxu0 0.0
        %584 = vmatpush1.msra.mxu0 0.0
        %585 = vmatprep.subr.mxu0 0.0
        %586 = vmatpush1.msra.mxu0 0.0
        %587 = vmatprep.subr.mxu0 0.0
        %588 = vmatpush1.msra.mxu0 0.0
        %589 = vmatprep.subr.mxu0 0.0
        %590 = vmatpush1.msra.mxu0 0.0
        %591 = vmatprep.subr.mxu0 0.0
        %592 = vmatpush1.msra.mxu0 0.0
        %593 = vmatprep.subr.mxu0 0.0
        %594 = vmatpush1.msra.mxu0 0.0
        %595 = vmatprep.subr.mxu0 0.0
        %596 = vmatpush1.msra.mxu0 0.0
        %597 = vmatprep.subr.mxu0 0.0
        %598 = vmatpush1.msra.mxu0 0.0
        %599 = vmatprep.subr.mxu0 0.0
        %600 = vmatpush1.msra.mxu0 0.0
        %601 = vmatprep.subr.mxu0 0.0
        %602 = vmatpush1.msra.mxu0 0.0
        %603 = vmatprep.subr.mxu0 0.0
        %604 = vmatpush1.msra.mxu0 0.0
        %605 = vmatprep.mubr.f32.mxu0 0.0
        %606 = vmatmul.mubr.f32.gmra.mrb[0].mxu0 %v441
        %v607 = vpop.f32.mrb[0].mxu0
        %v608 = vadd.f32 %v430, %v607
        %v609 = vpop.f32.mrb[0].mxu0
        %v610 = vadd.f32 %v434, %v609
        %611 = vmatprep.mubr.f32.mxu0 0.0
        %612 = vmatmul.mubr.f32.gmra.mrb[0].mxu0 %v444
        %v613 = vpop.f32.mrb[0].mxu0
        %v614 = vadd.f32 %v430, %v613
        %v615 = vpop.f32.mrb[0].mxu0
        %v616 = vadd.f32 %v434, %v615
        %617 = vmatprep.mubr.f32.mxu0 0.0
        %618 = vmatmul.mubr.f32.gmra.mrb[0].mxu0 %v447
        %v619 = vpop.f32.mrb[0].mxu0
        %v620 = vadd.f32 %v430, %v619
        %v621 = vpop.f32.mrb[0].mxu0
        %v622 = vadd.f32 %v434, %v621
        %623 = vmatprep.mubr.f32.mxu0 0.0
        %624 = vmatmul.mubr.f32.gmra.mrb[0].mxu0 %v450
        %v625 = vpop.f32.mrb[0].mxu0
        %v626 = vadd.f32 %v430, %v625
        %v627 = vpop.f32.mrb[0].mxu0
        %v628 = vadd.f32 %v434, %v627
        %629 = vdwg.mxu0
        %630 = vst [vmem:[#allocation2] sm:$0xff] %v519
        %631 = vst [vmem:[#allocation2 + $0x8] sm:$0xff] %v521
        %632 = vst [vmem:[#allocation2 + $0x10] sm:$0xff] %v608
        %633 = vst [vmem:[#allocation2 + $0x18] sm:$0xff] %v610
        %634 = vst [vmem:[#allocation2 + $0x20] sm:$0xff] %v525
        %635 = vst [vmem:[#allocation2 + $0x28] sm:$0xff] %v527
        %636 = vst [vmem:[#allocation2 + $0x30] sm:$0xff] %v614
        %637 = vst [vmem:[#allocation2 + $0x38] sm:$0xff] %v616
        %638 = vst [vmem:[#allocation2 + $0x40] sm:$0xff] %v531
        %639 = vst [vmem:[#allocation2 + $0x48] sm:$0xff] %v533
        %640 = vst [vmem:[#allocation2 + $0x50] sm:$0xff] %v620
        %641 = vst [vmem:[#allocation2 + $0x58] sm:$0xff] %v622
        %642 = vst [vmem:[#allocation2 + $0x60] sm:$0xff] %v537
        %643 = vst [vmem:[#allocation2 + $0x68] sm:$0xff] %v539
        %644 = vst [vmem:[#allocation2 + $0x70] sm:$0xff] %v626
        %645 = vst [vmem:[#allocation2 + $0x78] sm:$0xff] %v628
        %v646 = vld [vmem:[#allocation8] sm:$0xff]
        %v647 = vld [vmem:[#allocation8 + $0x8] sm:$0xff]
        %v648 = vld [vmem:[#allocation8 + $0x10] sm:$0xff]
        %v649 = vld [vmem:[#allocation8 + $0x18] sm:$0xff]
        %v650 = vld [vmem:[#allocation8 + $0x20] sm:$0xff]
        %v651 = vld [vmem:[#allocation8 + $0x28] sm:$0xff]
        %v652 = vld [vmem:[#allocation8 + $0x30] sm:$0xff]
        %v653 = vld [vmem:[#allocation8 + $0x38] sm:$0xff]
        %v654 = vld [vmem:[#allocation8 + $0x40] sm:$0xff]
        %v655 = vld [vmem:[#allocation8 + $0x48] sm:$0xff]
        %v656 = vld [vmem:[#allocation8 + $0x50] sm:$0xff]
        %v657 = vld [vmem:[#allocation8 + $0x58] sm:$0xff]
        %v658 = vld [vmem:[#allocation8 + $0x60] sm:$0xff]
        %v659 = vld [vmem:[#allocation8 + $0x68] sm:$0xff]
        %v660 = vld [vmem:[#allocation8 + $0x70] sm:$0xff]
        %v661 = vld [vmem:[#allocation8 + $0x78] sm:$0xff]
        %v662 = vld [vmem:[#allocation8 + $0x80] sm:$0xff]
        %v663 = vld [vmem:[#allocation8 + $0x88] sm:$0xff]
        %v664 = vld [vmem:[#allocation8 + $0x90] sm:$0xff]
        %v665 = vld [vmem:[#allocation8 + $0x98] sm:$0xff]
        %v666 = vld [vmem:[#allocation8 + $0xa0] sm:$0xff]
        %v667 = vld [vmem:[#allocation8 + $0xa8] sm:$0xff]
        %v668 = vld [vmem:[#allocation8 + $0xb0] sm:$0xff]
        %v669 = vld [vmem:[#allocation8 + $0xb8] sm:$0xff]
        %v670 = vld [vmem:[#allocation8 + $0xc0] sm:$0xff]
        %v671 = vld [vmem:[#allocation8 + $0xc8] sm:$0xff]
        %v672 = vld [vmem:[#allocation8 + $0xd0] sm:$0xff]
        %v673 = vld [vmem:[#allocation8 + $0xd8] sm:$0xff]
        %v674 = vld [vmem:[#allocation8 + $0xe0] sm:$0xff]
        %v675 = vld [vmem:[#allocation8 + $0xe8] sm:$0xff]
        %v676 = vld [vmem:[#allocation8 + $0xf0] sm:$0xff]
        %v677 = vld [vmem:[#allocation8 + $0xf8] sm:$0xff]
        %v678 = vld [vmem:[#allocation8 + $0x100] sm:$0xff]
        %v679 = vld [vmem:[#allocation8 + $0x108] sm:$0xff]
        %v680 = vld [vmem:[#allocation8 + $0x110] sm:$0xff]
        %v681 = vld [vmem:[#allocation8 + $0x118] sm:$0xff]
        %v682 = vld [vmem:[#allocation8 + $0x120] sm:$0xff]
        %v683 = vld [vmem:[#allocation8 + $0x128] sm:$0xff]
        %v684 = vld [vmem:[#allocation8 + $0x130] sm:$0xff]
        %v685 = vld [vmem:[#allocation8 + $0x138] sm:$0xff]
        %v686 = vld [vmem:[#allocation8 + $0x140] sm:$0xff]
        %v687 = vld [vmem:[#allocation8 + $0x148] sm:$0xff]
        %v688 = vld [vmem:[#allocation8 + $0x150] sm:$0xff]
        %v689 = vld [vmem:[#allocation8 + $0x158] sm:$0xff]
        %v690 = vld [vmem:[#allocation8 + $0x160] sm:$0xff]
        %v691 = vld [vmem:[#allocation8 + $0x168] sm:$0xff]
        %v692 = vld [vmem:[#allocation8 + $0x170] sm:$0xff]
        %v693 = vld [vmem:[#allocation8 + $0x178] sm:$0xff]
        %v694 = vld [vmem:[#allocation8 + $0x180] sm:$0xff]
        %v695 = vld [vmem:[#allocation8 + $0x188] sm:$0xff]
        %v696 = vld [vmem:[#allocation8 + $0x190] sm:$0xff]
        %v697 = vld [vmem:[#allocation8 + $0x198] sm:$0xff]
        %v698 = vld [vmem:[#allocation8 + $0x1a0] sm:$0xff]
        %v699 = vld [vmem:[#allocation8 + $0x1a8] sm:$0xff]
        %v700 = vld [vmem:[#allocation8 + $0x1b0] sm:$0xff]
        %v701 = vld [vmem:[#allocation8 + $0x1b8] sm:$0xff]
        %v702 = vld [vmem:[#allocation8 + $0x1c0] sm:$0xff]
        %v703 = vld [vmem:[#allocation8 + $0x1c8] sm:$0xff]
        %v704 = vld [vmem:[#allocation8 + $0x1d0] sm:$0xff]
        %v705 = vld [vmem:[#allocation8 + $0x1d8] sm:$0xff]
        %v706 = vld [vmem:[#allocation8 + $0x1e0] sm:$0xff]
        %v707 = vld [vmem:[#allocation8 + $0x1e8] sm:$0xff]
        %v708 = vld [vmem:[#allocation8 + $0x1f0] sm:$0xff]
        %v709 = vld [vmem:[#allocation8 + $0x1f8] sm:$0xff]
        %v710 = vld [vmem:[#allocation15] sm:$0xff]
        %v711 = vld [vmem:[#allocation17] sm:$0xff]
        %s712 = smul.u32 0, 4
        %s713 = smul.addr %s712, 8
        %s714 = scalar_lea.vmem [#allocation2], %s713
        %v715 = vld [vmem:[%s714] sm:$0xff]
        %v716 = vld [vmem:[%s714 + $0x8] sm:$0xff]
        %v717 = vld [vmem:[%s714 + $0x10] sm:$0xff]
        %v718 = vld [vmem:[%s714 + $0x18] sm:$0xff]
        %719 = vmatprep.subr.mxu0 %v647
        %720 = vmatpush1.msra.mxu0 %v646
        %721 = vmatprep.subr.mxu0 %v651
        %722 = vmatpush1.msra.mxu0 %v650
        %723 = vmatprep.subr.mxu0 %v655
        %724 = vmatpush1.msra.mxu0 %v654
        %725 = vmatprep.subr.mxu0 %v659
        %726 = vmatpush1.msra.mxu0 %v658
        %727 = vmatprep.subr.mxu0 %v663
        %728 = vmatpush1.msra.mxu0 %v662
        %729 = vmatprep.subr.mxu0 %v667
        %730 = vmatpush1.msra.mxu0 %v666
        %731 = vmatprep.subr.mxu0 %v671
        %732 = vmatpush1.msra.mxu0 %v670
        %733 = vmatprep.subr.mxu0 %v675
        %734 = vmatpush1.msra.mxu0 %v674
        %735 = vmatprep.subr.mxu0 %v679
        %736 = vmatpush1.msra.mxu0 %v678
        %737 = vmatprep.subr.mxu0 %v683
        %738 = vmatpush1.msra.mxu0 %v682
        %739 = vmatprep.subr.mxu0 %v687
        %740 = vmatpush1.msra.mxu0 %v686
        %741 = vmatprep.subr.mxu0 %v691
        %742 = vmatpush1.msra.mxu0 %v690
        %743 = vmatprep.subr.mxu0 %v695
        %744 = vmatpush1.msra.mxu0 %v694
        %745 = vmatprep.subr.mxu0 %v699
        %746 = vmatpush1.msra.mxu0 %v698
        %747 = vmatprep.subr.mxu0 %v703
        %748 = vmatpush1.msra.mxu0 %v702
        %749 = vmatprep.subr.mxu0 %v707
        %750 = vmatpush1.msra.mxu0 %v706
        %751 = vmatprep.subr.mxu0 0.0
        %752 = vmatpush1.msra.mxu0 0.0
        %753 = vmatprep.subr.mxu0 0.0
        %754 = vmatpush1.msra.mxu0 0.0
        %755 = vmatprep.subr.mxu0 0.0
        %756 = vmatpush1.msra.mxu0 0.0
        %757 = vmatprep.subr.mxu0 0.0
        %758 = vmatpush1.msra.mxu0 0.0
        %759 = vmatprep.subr.mxu0 0.0
        %760 = vmatpush1.msra.mxu0 0.0
        %761 = vmatprep.subr.mxu0 0.0
        %762 = vmatpush1.msra.mxu0 0.0
        %763 = vmatprep.subr.mxu0 0.0
        %764 = vmatpush1.msra.mxu0 0.0
        %765 = vmatprep.subr.mxu0 0.0
        %766 = vmatpush1.msra.mxu0 0.0
        %767 = vmatprep.subr.mxu0 0.0
        %768 = vmatpush1.msra.mxu0 0.0
        %769 = vmatprep.subr.mxu0 0.0
        %770 = vmatpush1.msra.mxu0 0.0
        %771 = vmatprep.subr.mxu0 0.0
        %772 = vmatpush1.msra.mxu0 0.0
        %773 = vmatprep.subr.mxu0 0.0
        %774 = vmatpush1.msra.mxu0 0.0
        %775 = vmatprep.subr.mxu0 0.0
        %776 = vmatpush1.msra.mxu0 0.0
        %777 = vmatprep.subr.mxu0 0.0
        %778 = vmatpush1.msra.mxu0 0.0
        %779 = vmatprep.subr.mxu0 0.0
        %780 = vmatpush1.msra.mxu0 0.0
        %781 = vmatprep.subr.mxu0 0.0
        %782 = vmatpush1.msra.mxu0 0.0
        %783 = vmatprep.mubr.f32.mxu0 0.0
        %784 = vmatmul.mubr.f32.gmra.mrb[0].mxu0 %v710
        %v785 = vpop.f32.mrb[0].mxu0
        %v786 = vadd.f32 0.0, %v785
        %v787 = vpop.f32.mrb[0].mxu0
        %v788 = vadd.f32 0.0, %v787
        %789 = vdwg.mxu0
        %790 = vmatprep.subr.mxu0 %v649
        %791 = vmatpush1.msra.mxu0 %v648
        %792 = vmatprep.subr.mxu0 %v653
        %793 = vmatpush1.msra.mxu0 %v652
        %794 = vmatprep.subr.mxu0 %v657
        %795 = vmatpush1.msra.mxu0 %v656
        %796 = vmatprep.subr.mxu0 %v661
        %797 = vmatpush1.msra.mxu0 %v660
        %798 = vmatprep.subr.mxu0 %v665
        %799 = vmatpush1.msra.mxu0 %v664
        %800 = vmatprep.subr.mxu0 %v669
        %801 = vmatpush1.msra.mxu0 %v668
        %802 = vmatprep.subr.mxu0 %v673
        %803 = vmatpush1.msra.mxu0 %v672
        %804 = vmatprep.subr.mxu0 %v677
        %805 = vmatpush1.msra.mxu0 %v676
        %806 = vmatprep.subr.mxu0 %v681
        %807 = vmatpush1.msra.mxu0 %v680
        %808 = vmatprep.subr.mxu0 %v685
        %809 = vmatpush1.msra.mxu0 %v684
        %810 = vmatprep.subr.mxu0 %v689
        %811 = vmatpush1.msra.mxu0 %v688
        %812 = vmatprep.subr.mxu0 %v693
        %813 = vmatpush1.msra.mxu0 %v692
        %814 = vmatprep.subr.mxu0 %v697
        %815 = vmatpush1.msra.mxu0 %v696
        %816 = vmatprep.subr.mxu0 %v701
        %817 = vmatpush1.msra.mxu0 %v700
        %818 = vmatprep.subr.mxu0 %v705
        %819 = vmatpush1.msra.mxu0 %v704
        %820 = vmatprep.subr.mxu0 %v709
        %821 = vmatpush1.msra.mxu0 %v708
        %822 = vmatprep.subr.mxu0 0.0
        %823 = vmatpush1.msra.mxu0 0.0
        %824 = vmatprep.subr.mxu0 0.0
        %825 = vmatpush1.msra.mxu0 0.0
        %826 = vmatprep.subr.mxu0 0.0
        %827 = vmatpush1.msra.mxu0 0.0
        %828 = vmatprep.subr.mxu0 0.0
        %829 = vmatpush1.msra.mxu0 0.0
        %830 = vmatprep.subr.mxu0 0.0
        %831 = vmatpush1.msra.mxu0 0.0
        %832 = vmatprep.subr.mxu0 0.0
        %833 = vmatpush1.msra.mxu0 0.0
        %834 = vmatprep.subr.mxu0 0.0
        %835 = vmatpush1.msra.mxu0 0.0
        %836 = vmatprep.subr.mxu0 0.0
        %837 = vmatpush1.msra.mxu0 0.0
        %838 = vmatprep.subr.mxu0 0.0
        %839 = vmatpush1.msra.mxu0 0.0
        %840 = vmatprep.subr.mxu0 0.0
        %841 = vmatpush1.msra.mxu0 0.0
        %842 = vmatprep.subr.mxu0 0.0
        %843 = vmatpush1.msra.mxu0 0.0
        %844 = vmatprep.subr.mxu0 0.0
        %845 = vmatpush1.msra.mxu0 0.0
        %846 = vmatprep.subr.mxu0 0.0
        %847 = vmatpush1.msra.mxu0 0.0
        %848 = vmatprep.subr.mxu0 0.0
        %849 = vmatpush1.msra.mxu0 0.0
        %850 = vmatprep.subr.mxu0 0.0
        %851 = vmatpush1.msra.mxu0 0.0
        %852 = vmatprep.subr.mxu0 0.0
        %853 = vmatpush1.msra.mxu0 0.0
        %854 = vmatprep.mubr.f32.mxu0 0.0
        %855 = vmatmul.mubr.f32.gmra.mrb[0].mxu0 %v710
        %v856 = vpop.f32.mrb[0].mxu0
        %v857 = vadd.f32 0.0, %v856
        %v858 = vpop.f32.mrb[0].mxu0
        %v859 = vadd.f32 0.0, %v858
        %860 = vdwg.mxu0
        %v861 = vadd.f32 %v715, %v786
        %v862 = vadd.f32 %v716, %v788
        %v863 = vadd.f32 %v717, %v857
        %v864 = vadd.f32 %v718, %v859
        %v865 = vxor.u32 %v861, 2147483648
        %v866 = vmul.f32 %v865, 1.442695
        %v867 = vpow.pop %v866
        %v868 = vadd.f32 %v867, 1.0
        %v869 = vrcp.pop %v868
        %v870 = vmul.f32 1.0, %v869
        %v871 = vxor.u32 %v862, 2147483648
        %v872 = vmul.f32 %v871, 1.442695
        %v873 = vpow.pop %v872
        %v874 = vadd.f32 %v873, 1.0
        %v875 = vrcp.pop %v874
        %v876 = vmul.f32 1.0, %v875
        %v877 = vtanh.pop %v863
        %v878 = vxor.u32 %v864, 2147483648
        %v879 = vmul.f32 %v878, 1.442695
        %v880 = vpow.pop %v879
        %v881 = vadd.f32 %v880, 1.0
        %v882 = vrcp.pop %v881
        %v883 = vmul.f32 1.0, %v882
        %v884 = vmul.f32 %v876, %v711
        %v885 = vmul.f32 %v870, %v877
        %v886 = vadd.f32 %v884, %v885
        %v887 = vtanh.pop %v886
        %v888 = vmul.f32 %v883, %v887
        %889 = vst [vmem:[%s382] sm:$0xff] %v888
        %s890 = smul.u32 1, 4
        %s891 = smul.addr %s890, 8
        %s892 = scalar_lea.vmem [#allocation2], %s891
        %v893 = vld [vmem:[%s892] sm:$0xff]
        %v894 = vld [vmem:[%s892 + $0x8] sm:$0xff]
        %v895 = vld [vmem:[%s892 + $0x10] sm:$0xff]
        %v896 = vld [vmem:[%s892 + $0x18] sm:$0xff]
        %897 = vmatprep.subr.mxu0 %v647
        %898 = vmatpush1.msra.mxu0 %v646
        %899 = vmatprep.subr.mxu0 %v651
        %900 = vmatpush1.msra.mxu0 %v650
        %901 = vmatprep.subr.mxu0 %v655
        %902 = vmatpush1.msra.mxu0 %v654
        %903 = vmatprep.subr.mxu0 %v659
        %904 = vmatpush1.msra.mxu0 %v658
        %905 = vmatprep.subr.mxu0 %v663
        %906 = vmatpush1.msra.mxu0 %v662
        %907 = vmatprep.subr.mxu0 %v667
        %908 = vmatpush1.msra.mxu0 %v666
        %909 = vmatprep.subr.mxu0 %v671
        %910 = vmatpush1.msra.mxu0 %v670
        %911 = vmatprep.subr.mxu0 %v675
        %912 = vmatpush1.msra.mxu0 %v674
        %913 = vmatprep.subr.mxu0 %v679
        %914 = vmatpush1.msra.mxu0 %v678
        %915 = vmatprep.subr.mxu0 %v683
        %916 = vmatpush1.msra.mxu0 %v682
        %917 = vmatprep.subr.mxu0 %v687
        %918 = vmatpush1.msra.mxu0 %v686
        %919 = vmatprep.subr.mxu0 %v691
        %920 = vmatpush1.msra.mxu0 %v690
        %921 = vmatprep.subr.mxu0 %v695
        %922 = vmatpush1.msra.mxu0 %v694
        %923 = vmatprep.subr.mxu0 %v699
        %924 = vmatpush1.msra.mxu0 %v698
        %925 = vmatprep.subr.mxu0 %v703
        %926 = vmatpush1.msra.mxu0 %v702
        %927 = vmatprep.subr.mxu0 %v707
        %928 = vmatpush1.msra.mxu0 %v706
        %929 = vmatprep.subr.mxu0 0.0
        %930 = vmatpush1.msra.mxu0 0.0
        %931 = vmatprep.subr.mxu0 0.0
        %932 = vmatpush1.msra.mxu0 0.0
        %933 = vmatprep.subr.mxu0 0.0
        %934 = vmatpush1.msra.mxu0 0.0
        %935 = vmatprep.subr.mxu0 0.0
        %936 = vmatpush1.msra.mxu0 0.0
        %937 = vmatprep.subr.mxu0 0.0
        %938 = vmatpush1.msra.mxu0 0.0
        %939 = vmatprep.subr.mxu0 0.0
        %940 = vmatpush1.msra.mxu0 0.0
        %941 = vmatprep.subr.mxu0 0.0
        %942 = vmatpush1.msra.mxu0 0.0
        %943 = vmatprep.subr.mxu0 0.0
        %944 = vmatpush1.msra.mxu0 0.0
        %945 = vmatprep.subr.mxu0 0.0
        %946 = vmatpush1.msra.mxu0 0.0
        %947 = vmatprep.subr.mxu0 0.0
        %948 = vmatpush1.msra.mxu0 0.0
        %949 = vmatprep.subr.mxu0 0.0
        %950 = vmatpush1.msra.mxu0 0.0
        %951 = vmatprep.subr.mxu0 0.0
        %952 = vmatpush1.msra.mxu0 0.0
        %953 = vmatprep.subr.mxu0 0.0
        %954 = vmatpush1.msra.mxu0 0.0
        %955 = vmatprep.subr.mxu0 0.0
        %956 = vmatpush1.msra.mxu0 0.0
        %957 = vmatprep.subr.mxu0 0.0
        %958 = vmatpush1.msra.mxu0 0.0
        %959 = vmatprep.subr.mxu0 0.0
        %960 = vmatpush1.msra.mxu0 0.0
        %961 = vmatprep.mubr.f32.mxu0 0.0
        %962 = vmatmul.mubr.f32.gmra.mrb[0].mxu0 %v888
        %v963 = vpop.f32.mrb[0].mxu0
        %v964 = vadd.f32 0.0, %v963
        %v965 = vpop.f32.mrb[0].mxu0
        %v966 = vadd.f32 0.0, %v965
        %967 = vdwg.mxu0
        %968 = vmatprep.subr.mxu0 %v649
        %969 = vmatpush1.msra.mxu0 %v648
        %970 = vmatprep.subr.mxu0 %v653
        %971 = vmatpush1.msra.mxu0 %v652
        %972 = vmatprep.subr.mxu0 %v657
        %973 = vmatpush1.msra.mxu0 %v656
        %974 = vmatprep.subr.mxu0 %v661
        %975 = vmatpush1.msra.mxu0 %v660
        %976 = vmatprep.subr.mxu0 %v665
        %977 = vmatpush1.msra.mxu0 %v664
        %978 = vmatprep.subr.mxu0 %v669
        %979 = vmatpush1.msra.mxu0 %v668
        %980 = vmatprep.subr.mxu0 %v673
        %981 = vmatpush1.msra.mxu0 %v672
        %982 = vmatprep.subr.mxu0 %v677
        %983 = vmatpush1.msra.mxu0 %v676
        %984 = vmatprep.subr.mxu0 %v681
        %985 = vmatpush1.msra.mxu0 %v680
        %986 = vmatprep.subr.mxu0 %v685
        %987 = vmatpush1.msra.mxu0 %v684
        %988 = vmatprep.subr.mxu0 %v689
        %989 = vmatpush1.msra.mxu0 %v688
        %990 = vmatprep.subr.mxu0 %v693
        %991 = vmatpush1.msra.mxu0 %v692
        %992 = vmatprep.subr.mxu0 %v697
        %993 = vmatpush1.msra.mxu0 %v696
        %994 = vmatprep.subr.mxu0 %v701
        %995 = vmatpush1.msra.mxu0 %v700
        %996 = vmatprep.subr.mxu0 %v705
        %997 = vmatpush1.msra.mxu0 %v704
        %998 = vmatprep.subr.mxu0 %v709
        %999 = vmatpush1.msra.mxu0 %v708
        %1000 = vmatprep.subr.mxu0 0.0
        %1001 = vmatpush1.msra.mxu0 0.0
        %1002 = vmatprep.subr.mxu0 0.0
        %1003 = vmatpush1.msra.mxu0 0.0
        %1004 = vmatprep.subr.mxu0 0.0
        %1005 = vmatpush1.msra.mxu0 0.0
        %1006 = vmatprep.subr.mxu0 0.0
        %1007 = vmatpush1.msra.mxu0 0.0
        %1008 = vmatprep.subr.mxu0 0.0
        %1009 = vmatpush1.msra.mxu0 0.0
        %1010 = vmatprep.subr.mxu0 0.0
        %1011 = vmatpush1.msra.mxu0 0.0
        %1012 = vmatprep.subr.mxu0 0.0
        %1013 = vmatpush1.msra.mxu0 0.0
        %1014 = vmatprep.subr.mxu0 0.0
        %1015 = vmatpush1.msra.mxu0 0.0
        %1016 = vmatprep.subr.mxu0 0.0
        %1017 = vmatpush1.msra.mxu0 0.0
        %1018 = vmatprep.subr.mxu0 0.0
        %1019 = vmatpush1.msra.mxu0 0.0
        %1020 = vmatprep.subr.mxu0 0.0
        %1021 = vmatpush1.msra.mxu0 0.0
        %1022 = vmatprep.subr.mxu0 0.0
        %1023 = vmatpush1.msra.mxu0 0.0
        %1024 = vmatprep.subr.mxu0 0.0
        %1025 = vmatpush1.msra.mxu0 0.0
        %1026 = vmatprep.subr.mxu0 0.0
        %1027 = vmatpush1.msra.mxu0 0.0
        %1028 = vmatprep.subr.mxu0 0.0
        %1029 = vmatpush1.msra.mxu0 0.0
        %1030 = vmatprep.subr.mxu0 0.0
        %1031 = vmatpush1.msra.mxu0 0.0
        %1032 = vmatprep.mubr.f32.mxu0 0.0
        %1033 = vmatmul.mubr.f32.gmra.mrb[0].mxu0 %v888
        %v1034 = vpop.f32.mrb[0].mxu0
        %v1035 = vadd.f32 0.0, %v1034
        %v1036 = vpop.f32.mrb[0].mxu0
        %v1037 = vadd.f32 0.0, %v1036
        %1038 = vdwg.mxu0
        %v1039 = vadd.f32 %v893, %v964
        %v1040 = vadd.f32 %v894, %v966
        %v1041 = vadd.f32 %v895, %v1035
        %v1042 = vadd.f32 %v896, %v1037
        %v1043 = vxor.u32 %v1039, 2147483648
        %v1044 = vmul.f32 %v1043, 1.442695
        %v1045 = vpow.pop %v1044
        %v1046 = vadd.f32 %v1045, 1.0
        %v1047 = vrcp.pop %v1046
        %v1048 = vmul.f32 1.0, %v1047
        %v1049 = vxor.u32 %v1040, 2147483648
        %v1050 = vmul.f32 %v1049, 1.442695
        %v1051 = vpow.pop %v1050
        %v1052 = vadd.f32 %v1051, 1.0
        %v1053 = vrcp.pop %v1052
        %v1054 = vmul.f32 1.0, %v1053
        %v1055 = vtanh.pop %v1041
        %v1056 = vxor.u32 %v1042, 2147483648
        %v1057 = vmul.f32 %v1056, 1.442695
        %v1058 = vpow.pop %v1057
        %v1059 = vadd.f32 %v1058, 1.0
        %v1060 = vrcp.pop %v1059
        %v1061 = vmul.f32 1.0, %v1060
        %v1062 = vmul.f32 %v1054, %v886
        %v1063 = vmul.f32 %v1048, %v1055
        %v1064 = vadd.f32 %v1062, %v1063
        %v1065 = vtanh.pop %v1064
        %v1066 = vmul.f32 %v1061, %v1065
        %s1067 = scalar_lea.vmem %s382, 8 [#allocation14]
        %1068 = vst [vmem:[%s1067] sm:$0xff] %v1066
        %s1069 = smul.u32 2, 4
        %s1070 = smul.addr %s1069, 8
        %s1071 = scalar_lea.vmem [#allocation2], %s1070
        %v1072 = vld [vmem:[%s1071] sm:$0xff]
        %v1073 = vld [vmem:[%s1071 + $0x8] sm:$0xff]
        %v1074 = vld [vmem:[%s1071 + $0x10] sm:$0xff]
        %v1075 = vld [vmem:[%s1071 + $0x18] sm:$0xff]
        %1076 = vmatprep.subr.mxu0 %v647
        %1077 = vmatpush1.msra.mxu0 %v646
        %1078 = vmatprep.subr.mxu0 %v651
        %1079 = vmatpush1.msra.mxu0 %v650
        %1080 = vmatprep.subr.mxu0 %v655
        %1081 = vmatpush1.msra.mxu0 %v654
        %1082 = vmatprep.subr.mxu0 %v659
        %1083 = vmatpush1.msra.mxu0 %v658
        %1084 = vmatprep.subr.mxu0 %v663
        %1085 = vmatpush1.msra.mxu0 %v662
        %1086 = vmatprep.subr.mxu0 %v667
        %1087 = vmatpush1.msra.mxu0 %v666
        %1088 = vmatprep.subr.mxu0 %v671
        %1089 = vmatpush1.msra.mxu0 %v670
        %1090 = vmatprep.subr.mxu0 %v675
        %1091 = vmatpush1.msra.mxu0 %v674
        %1092 = vmatprep.subr.mxu0 %v679
        %1093 = vmatpush1.msra.mxu0 %v678
        %1094 = vmatprep.subr.mxu0 %v683
        %1095 = vmatpush1.msra.mxu0 %v682
        %1096 = vmatprep.subr.mxu0 %v687
        %1097 = vmatpush1.msra.mxu0 %v686
        %1098 = vmatprep.subr.mxu0 %v691
        %1099 = vmatpush1.msra.mxu0 %v690
        %1100 = vmatprep.subr.mxu0 %v695
        %1101 = vmatpush1.msra.mxu0 %v694
        %1102 = vmatprep.subr.mxu0 %v699
        %1103 = vmatpush1.msra.mxu0 %v698
        %1104 = vmatprep.subr.mxu0 %v703
        %1105 = vmatpush1.msra.mxu0 %v702
        %1106 = vmatprep.subr.mxu0 %v707
        %1107 = vmatpush1.msra.mxu0 %v706
        %1108 = vmatprep.subr.mxu0 0.0
        %1109 = vmatpush1.msra.mxu0 0.0
        %1110 = vmatprep.subr.mxu0 0.0
        %1111 = vmatpush1.msra.mxu0 0.0
        %1112 = vmatprep.subr.mxu0 0.0
        %1113 = vmatpush1.msra.mxu0 0.0
        %1114 = vmatprep.subr.mxu0 0.0
        %1115 = vmatpush1.msra.mxu0 0.0
        %1116 = vmatprep.subr.mxu0 0.0
        %1117 = vmatpush1.msra.mxu0 0.0
        %1118 = vmatprep.subr.mxu0 0.0
        %1119 = vmatpush1.msra.mxu0 0.0
        %1120 = vmatprep.subr.mxu0 0.0
        %1121 = vmatpush1.msra.mxu0 0.0
        %1122 = vmatprep.subr.mxu0 0.0
        %1123 = vmatpush1.msra.mxu0 0.0
        %1124 = vmatprep.subr.mxu0 0.0
        %1125 = vmatpush1.msra.mxu0 0.0
        %1126 = vmatprep.subr.mxu0 0.0
        %1127 = vmatpush1.msra.mxu0 0.0
        %1128 = vmatprep.subr.mxu0 0.0
        %1129 = vmatpush1.msra.mxu0 0.0
        %1130 = vmatprep.subr.mxu0 0.0
        %1131 = vmatpush1.msra.mxu0 0.0
        %1132 = vmatprep.subr.mxu0 0.0
        %1133 = vmatpush1.msra.mxu0 0.0
        %1134 = vmatprep.subr.mxu0 0.0
        %1135 = vmatpush1.msra.mxu0 0.0
        %1136 = vmatprep.subr.mxu0 0.0
        %1137 = vmatpush1.msra.mxu0 0.0
        %1138 = vmatprep.subr.mxu0 0.0
        %1139 = vmatpush1.msra.mxu0 0.0
        %1140 = vmatprep.mubr.f32.mxu0 0.0
        %1141 = vmatmul.mubr.f32.gmra.mrb[0].mxu0 %v1066
        %v1142 = vpop.f32.mrb[0].mxu0
        %v1143 = vadd.f32 0.0, %v1142
        %v1144 = vpop.f32.mrb[0].mxu0
        %v1145 = vadd.f32 0.0, %v1144
        %1146 = vdwg.mxu0
        %1147 = vmatprep.subr.mxu0 %v649
        %1148 = vmatpush1.msra.mxu0 %v648
        %1149 = vmatprep.subr.mxu0 %v653
        %1150 = vmatpush1.msra.mxu0 %v652
        %1151 = vmatprep.subr.mxu0 %v657
        %1152 = vmatpush1.msra.mxu0 %v656
        %1153 = vmatprep.subr.mxu0 %v661
        %1154 = vmatpush1.msra.mxu0 %v660
        %1155 = vmatprep.subr.mxu0 %v665
        %1156 = vmatpush1.msra.mxu0 %v664
        %1157 = vmatprep.subr.mxu0 %v669
        %1158 = vmatpush1.msra.mxu0 %v668
        %1159 = vmatprep.subr.mxu0 %v673
        %1160 = vmatpush1.msra.mxu0 %v672
        %1161 = vmatprep.subr.mxu0 %v677
        %1162 = vmatpush1.msra.mxu0 %v676
        %1163 = vmatprep.subr.mxu0 %v681
        %1164 = vmatpush1.msra.mxu0 %v680
        %1165 = vmatprep.subr.mxu0 %v685
        %1166 = vmatpush1.msra.mxu0 %v684
        %1167 = vmatprep.subr.mxu0 %v689
        %1168 = vmatpush1.msra.mxu0 %v688
        %1169 = vmatprep.subr.mxu0 %v693
        %1170 = vmatpush1.msra.mxu0 %v692
        %1171 = vmatprep.subr.mxu0 %v697
        %1172 = vmatpush1.msra.mxu0 %v696
        %1173 = vmatprep.subr.mxu0 %v701
        %1174 = vmatpush1.msra.mxu0 %v700
        %1175 = vmatprep.subr.mxu0 %v705
        %1176 = vmatpush1.msra.mxu0 %v704
        %1177 = vmatprep.subr.mxu0 %v709
        %1178 = vmatpush1.msra.mxu0 %v708
        %1179 = vmatprep.subr.mxu0 0.0
        %1180 = vmatpush1.msra.mxu0 0.0
        %1181 = vmatprep.subr.mxu0 0.0
        %1182 = vmatpush1.msra.mxu0 0.0
        %1183 = vmatprep.subr.mxu0 0.0
        %1184 = vmatpush1.msra.mxu0 0.0
        %1185 = vmatprep.subr.mxu0 0.0
        %1186 = vmatpush1.msra.mxu0 0.0
        %1187 = vmatprep.subr.mxu0 0.0
        %1188 = vmatpush1.msra.mxu0 0.0
        %1189 = vmatprep.subr.mxu0 0.0
        %1190 = vmatpush1.msra.mxu0 0.0
        %1191 = vmatprep.subr.mxu0 0.0
        %1192 = vmatpush1.msra.mxu0 0.0
        %1193 = vmatprep.subr.mxu0 0.0
        %1194 = vmatpush1.msra.mxu0 0.0
        %1195 = vmatprep.subr.mxu0 0.0
        %1196 = vmatpush1.msra.mxu0 0.0
        %1197 = vmatprep.subr.mxu0 0.0
        %1198 = vmatpush1.msra.mxu0 0.0
        %1199 = vmatprep.subr.mxu0 0.0
        %1200 = vmatpush1.msra.mxu0 0.0
        %1201 = vmatprep.subr.mxu0 0.0
        %1202 = vmatpush1.msra.mxu0 0.0
        %1203 = vmatprep.subr.mxu0 0.0
        %1204 = vmatpush1.msra.mxu0 0.0
        %1205 = vmatprep.subr.mxu0 0.0
        %1206 = vmatpush1.msra.mxu0 0.0
        %1207 = vmatprep.subr.mxu0 0.0
        %1208 = vmatpush1.msra.mxu0 0.0
        %1209 = vmatprep.subr.mxu0 0.0
        %1210 = vmatpush1.msra.mxu0 0.0
        %1211 = vmatprep.mubr.f32.mxu0 0.0
        %1212 = vmatmul.mubr.f32.gmra.mrb[0].mxu0 %v1066
        %v1213 = vpop.f32.mrb[0].mxu0
        %v1214 = vadd.f32 0.0, %v1213
        %v1215 = vpop.f32.mrb[0].mxu0
        %v1216 = vadd.f32 0.0, %v1215
        %1217 = vdwg.mxu0
        %v1218 = vadd.f32 %v1072, %v1143
        %v1219 = vadd.f32 %v1073, %v1145
        %v1220 = vadd.f32 %v1074, %v1214
        %v1221 = vadd.f32 %v1075, %v1216
        %v1222 = vxor.u32 %v1218, 2147483648
        %v1223 = vmul.f32 %v1222, 1.442695
        %v1224 = vpow.pop %v1223
        %v1225 = vadd.f32 %v1224, 1.0
        %v1226 = vrcp.pop %v1225
        %v1227 = vmul.f32 1.0, %v1226
        %v1228 = vxor.u32 %v1219, 2147483648
        %v1229 = vmul.f32 %v1228, 1.442695
        %v1230 = vpow.pop %v1229
        %v1231 = vadd.f32 %v1230, 1.0
        %v1232 = vrcp.pop %v1231
        %v1233 = vmul.f32 1.0, %v1232
        %v1234 = vtanh.pop %v1220
        %v1235 = vxor.u32 %v1221, 2147483648
        %v1236 = vmul.f32 %v1235, 1.442695
        %v1237 = vpow.pop %v1236
        %v1238 = vadd.f32 %v1237, 1.0
        %v1239 = vrcp.pop %v1238
        %v1240 = vmul.f32 1.0, %v1239
        %v1241 = vmul.f32 %v1233, %v1064
        %v1242 = vmul.f32 %v1227, %v1234
        %v1243 = vadd.f32 %v1241, %v1242
        %v1244 = vtanh.pop %v1243
        %v1245 = vmul.f32 %v1240, %v1244
        %s1246 = scalar_lea.vmem %s382, 16 [#allocation14]
        %1247 = vst [vmem:[%s1246] sm:$0xff] %v1245
        %s1248 = smul.u32 3, 4
        %s1249 = smul.addr %s1248, 8
        %s1250 = scalar_lea.vmem [#allocation2], %s1249
        %v1251 = vld [vmem:[%s1250] sm:$0xff]
        %v1252 = vld [vmem:[%s1250 + $0x8] sm:$0xff]
        %v1253 = vld [vmem:[%s1250 + $0x10] sm:$0xff]
        %v1254 = vld [vmem:[%s1250 + $0x18] sm:$0xff]
        %1255 = vmatprep.subr.mxu0 %v647
        %1256 = vmatpush1.msra.mxu0 %v646
        %1257 = vmatprep.subr.mxu0 %v651
        %1258 = vmatpush1.msra.mxu0 %v650
        %1259 = vmatprep.subr.mxu0 %v655
        %1260 = vmatpush1.msra.mxu0 %v654
        %1261 = vmatprep.subr.mxu0 %v659
        %1262 = vmatpush1.msra.mxu0 %v658
        %1263 = vmatprep.subr.mxu0 %v663
        %1264 = vmatpush1.msra.mxu0 %v662
        %1265 = vmatprep.subr.mxu0 %v667
        %1266 = vmatpush1.msra.mxu0 %v666
        %1267 = vmatprep.subr.mxu0 %v671
        %1268 = vmatpush1.msra.mxu0 %v670
        %1269 = vmatprep.subr.mxu0 %v675
        %1270 = vmatpush1.msra.mxu0 %v674
        %1271 = vmatprep.subr.mxu0 %v679
        %1272 = vmatpush1.msra.mxu0 %v678
        %1273 = vmatprep.subr.mxu0 %v683
        %1274 = vmatpush1.msra.mxu0 %v682
        %1275 = vmatprep.subr.mxu0 %v687
        %1276 = vmatpush1.msra.mxu0 %v686
        %1277 = vmatprep.subr.mxu0 %v691
        %1278 = vmatpush1.msra.mxu0 %v690
        %1279 = vmatprep.subr.mxu0 %v695
        %1280 = vmatpush1.msra.mxu0 %v694
        %1281 = vmatprep.subr.mxu0 %v699
        %1282 = vmatpush1.msra.mxu0 %v698
        %1283 = vmatprep.subr.mxu0 %v703
        %1284 = vmatpush1.msra.mxu0 %v702
        %1285 = vmatprep.subr.mxu0 %v707
        %1286 = vmatpush1.msra.mxu0 %v706
        %1287 = vmatprep.subr.mxu0 0.0
        %1288 = vmatpush1.msra.mxu0 0.0
        %1289 = vmatprep.subr.mxu0 0.0
        %1290 = vmatpush1.msra.mxu0 0.0
        %1291 = vmatprep.subr.mxu0 0.0
        %1292 = vmatpush1.msra.mxu0 0.0
        %1293 = vmatprep.subr.mxu0 0.0
        %1294 = vmatpush1.msra.mxu0 0.0
        %1295 = vmatprep.subr.mxu0 0.0
        %1296 = vmatpush1.msra.mxu0 0.0
        %1297 = vmatprep.subr.mxu0 0.0
        %1298 = vmatpush1.msra.mxu0 0.0
        %1299 = vmatprep.subr.mxu0 0.0
        %1300 = vmatpush1.msra.mxu0 0.0
        %1301 = vmatprep.subr.mxu0 0.0
        %1302 = vmatpush1.msra.mxu0 0.0
        %1303 = vmatprep.subr.mxu0 0.0
        %1304 = vmatpush1.msra.mxu0 0.0
        %1305 = vmatprep.subr.mxu0 0.0
        %1306 = vmatpush1.msra.mxu0 0.0
        %1307 = vmatprep.subr.mxu0 0.0
        %1308 = vmatpush1.msra.mxu0 0.0
        %1309 = vmatprep.subr.mxu0 0.0
        %1310 = vmatpush1.msra.mxu0 0.0
        %1311 = vmatprep.subr.mxu0 0.0
        %1312 = vmatpush1.msra.mxu0 0.0
        %1313 = vmatprep.subr.mxu0 0.0
        %1314 = vmatpush1.msra.mxu0 0.0
        %1315 = vmatprep.subr.mxu0 0.0
        %1316 = vmatpush1.msra.mxu0 0.0
        %1317 = vmatprep.subr.mxu0 0.0
        %1318 = vmatpush1.msra.mxu0 0.0
        %1319 = vmatprep.mubr.f32.mxu0 0.0
        %1320 = vmatmul.mubr.f32.gmra.mrb[0].mxu0 %v1245
        %v1321 = vpop.f32.mrb[0].mxu0
        %v1322 = vadd.f32 0.0, %v1321
        %v1323 = vpop.f32.mrb[0].mxu0
        %v1324 = vadd.f32 0.0, %v1323
        %1325 = vdwg.mxu0
        %1326 = vmatprep.subr.mxu0 %v649
        %1327 = vmatpush1.msra.mxu0 %v648
        %1328 = vmatprep.subr.mxu0 %v653
        %1329 = vmatpush1.msra.mxu0 %v652
        %1330 = vmatprep.subr.mxu0 %v657
        %1331 = vmatpush1.msra.mxu0 %v656
        %1332 = vmatprep.subr.mxu0 %v661
        %1333 = vmatpush1.msra.mxu0 %v660
        %1334 = vmatprep.subr.mxu0 %v665
        %1335 = vmatpush1.msra.mxu0 %v664
        %1336 = vmatprep.subr.mxu0 %v669
        %1337 = vmatpush1.msra.mxu0 %v668
        %1338 = vmatprep.subr.mxu0 %v673
        %1339 = vmatpush1.msra.mxu0 %v672
        %1340 = vmatprep.subr.mxu0 %v677
        %1341 = vmatpush1.msra.mxu0 %v676
        %1342 = vmatprep.subr.mxu0 %v681
        %1343 = vmatpush1.msra.mxu0 %v680
        %1344 = vmatprep.subr.mxu0 %v685
        %1345 = vmatpush1.msra.mxu0 %v684
        %1346 = vmatprep.subr.mxu0 %v689
        %1347 = vmatpush1.msra.mxu0 %v688
        %1348 = vmatprep.subr.mxu0 %v693
        %1349 = vmatpush1.msra.mxu0 %v692
        %1350 = vmatprep.subr.mxu0 %v697
        %1351 = vmatpush1.msra.mxu0 %v696
        %1352 = vmatprep.subr.mxu0 %v701
        %1353 = vmatpush1.msra.mxu0 %v700
        %1354 = vmatprep.subr.mxu0 %v705
        %1355 = vmatpush1.msra.mxu0 %v704
        %1356 = vmatprep.subr.mxu0 %v709
        %1357 = vmatpush1.msra.mxu0 %v708
        %1358 = vmatprep.subr.mxu0 0.0
        %1359 = vmatpush1.msra.mxu0 0.0
        %1360 = vmatprep.subr.mxu0 0.0
        %1361 = vmatpush1.msra.mxu0 0.0
        %1362 = vmatprep.subr.mxu0 0.0
        %1363 = vmatpush1.msra.mxu0 0.0
        %1364 = vmatprep.subr.mxu0 0.0
        %1365 = vmatpush1.msra.mxu0 0.0
        %1366 = vmatprep.subr.mxu0 0.0
        %1367 = vmatpush1.msra.mxu0 0.0
        %1368 = vmatprep.subr.mxu0 0.0
        %1369 = vmatpush1.msra.mxu0 0.0
        %1370 = vmatprep.subr.mxu0 0.0
        %1371 = vmatpush1.msra.mxu0 0.0
        %1372 = vmatprep.subr.mxu0 0.0
        %1373 = vmatpush1.msra.mxu0 0.0
        %1374 = vmatprep.subr.mxu0 0.0
        %1375 = vmatpush1.msra.mxu0 0.0
        %1376 = vmatprep.subr.mxu0 0.0
        %1377 = vmatpush1.msra.mxu0 0.0
        %1378 = vmatprep.subr.mxu0 0.0
        %1379 = vmatpush1.msra.mxu0 0.0
        %1380 = vmatprep.subr.mxu0 0.0
        %1381 = vmatpush1.msra.mxu0 0.0
        %1382 = vmatprep.subr.mxu0 0.0
        %1383 = vmatpush1.msra.mxu0 0.0
        %1384 = vmatprep.subr.mxu0 0.0
        %1385 = vmatpush1.msra.mxu0 0.0
        %1386 = vmatprep.subr.mxu0 0.0
        %1387 = vmatpush1.msra.mxu0 0.0
        %1388 = vmatprep.subr.mxu0 0.0
        %1389 = vmatpush1.msra.mxu0 0.0
        %1390 = vmatprep.mubr.f32.mxu0 0.0
        %1391 = vmatmul.mubr.f32.gmra.mrb[0].mxu0 %v1245
        %v1392 = vpop.f32.mrb[0].mxu0
        %v1393 = vadd.f32 0.0, %v1392
        %v1394 = vpop.f32.mrb[0].mxu0
        %v1395 = vadd.f32 0.0, %v1394
        %1396 = vdwg.mxu0
        %v1397 = vadd.f32 %v1251, %v1322
        %v1398 = vadd.f32 %v1252, %v1324
        %v1399 = vadd.f32 %v1253, %v1393
        %v1400 = vadd.f32 %v1254, %v1395
        %v1401 = vxor.u32 %v1397, 2147483648
        %v1402 = vmul.f32 %v1401, 1.442695
        %v1403 = vpow.pop %v1402
        %v1404 = vadd.f32 %v1403, 1.0
        %v1405 = vrcp.pop %v1404
        %v1406 = vmul.f32 1.0, %v1405
        %v1407 = vxor.u32 %v1398, 2147483648
        %v1408 = vmul.f32 %v1407, 1.442695
        %v1409 = vpow.pop %v1408
        %v1410 = vadd.f32 %v1409, 1.0
        %v1411 = vrcp.pop %v1410
        %v1412 = vmul.f32 1.0, %v1411
        %v1413 = vtanh.pop %v1399
        %v1414 = vxor.u32 %v1400, 2147483648
        %v1415 = vmul.f32 %v1414, 1.442695
        %v1416 = vpow.pop %v1415
        %v1417 = vadd.f32 %v1416, 1.0
        %v1418 = vrcp.pop %v1417
        %v1419 = vmul.f32 1.0, %v1418
        %v1420 = vmul.f32 %v1412, %v1243
        %v1421 = vmul.f32 %v1406, %v1413
        %v1422 = vadd.f32 %v1420, %v1421
        %v1423 = vtanh.pop %v1422
        %v1424 = vmul.f32 %v1419, %v1423
        %s1425 = scalar_lea.vmem %s382, 24 [#allocation14]
        %1426 = vst [vmem:[%s1425] sm:$0xff] %v1424
        %1427 = vst [vmem:[#allocation15] sm:$0xff] %v1424
        %1428 = vst [vmem:[#allocation17] sm:$0xff] %v1422
        %s1429 = sand.u32 %s169, 1
        %s1430 = scalar_lea.sflag [#allocation5], %s1429
        %s1431 = sand.u32 %s169, 1
        %s1432 = smul.addr %s1431, 32
        %s1433 = scalar_lea.vmem [#allocation14], %s1432
        // Predicated region
        $region73: #{tpu_custom_call.1} parent=43 // pred_check
          %p1434 = pneg %p179
        $region74: #{tpu_custom_call.1} parent=43 // pred_check_branch
          %1436 = sbr.rel (%p1434) target = $region76
        $region75: #{tpu_custom_call.1} parent=43 // pred_region
          %s1437 = smul.u32 4, %s30
          %s1439 = ssub.s32 512, 512
          %1440 = vsyncadd %s1430, %s1439
          %s1441 = smul.addr %s1437, 128
          %s1442 = scalar_lea.hbm %s6, %s1441
          %s1443 = sshll.u32 %s1433, 4
          %s1444 = int_to_ptr.vmem [resolvable:$true] %s1443
          %1449 = dma.vmem_to_hbm [thread:$0]  %s1444, 512, %s1442, %s1430, 128, 128, 8
        $region76: #{tpu_custom_call.1} parent=43 // pred_fallthru
          _
        // Predicated region
        $region77: #{tpu_custom_call.1} parent=43 // pred_check
          %p1450 = pneg %p200
        $region78: #{tpu_custom_call.1} parent=43 // pred_check_branch
          %1452 = sbr.rel (%p1450) target = $region80
        $region79: #{tpu_custom_call.1} parent=43 // pred_region
          %s1454 = ssub.s32 128, 128
          %1455 = vsyncadd [#allocation16], %s1454
          %s1457 = sshll.u32 [#allocation15], 4
          %s1458 = int_to_ptr.vmem [resolvable:$true] %s1457
          %1460 = dma.vmem_to_hbm [thread:$0]  %s1458, 128, %s7, [#allocation16]
        $region80: #{tpu_custom_call.1} parent=43 // pred_fallthru
          _
        // Predicated region
        $region81: #{tpu_custom_call.1} parent=43 // pred_check
          %p1461 = pneg %p221
        $region82: #{tpu_custom_call.1} parent=43 // pred_check_branch
          %1463 = sbr.rel (%p1461) target = $region84
        $region83: #{tpu_custom_call.1} parent=43 // pred_region
          %s1465 = ssub.s32 128, 128
          %1466 = vsyncadd [#allocation16], %s1465
          %s1468 = sshll.u32 [#allocation17], 4
          %s1469 = int_to_ptr.vmem [resolvable:$true] %s1468
          %1471 = dma.vmem_to_hbm [thread:$0]  %s1469, 128, %s8, [#allocation16]
        $region84: #{tpu_custom_call.1} parent=43 // pred_fallthru
          _
        // Predicated region
        $region85: #{tpu_custom_call.1} parent=43 // pred_check
          %p1472 = pneg %p200
        $region86: #{tpu_custom_call.1} parent=43 // pred_check_branch
          %1474 = sbr.rel (%p1472) target = $region88
        $region87: #{tpu_custom_call.1} parent=43 // pred_region
          %1475 = dma.done [#allocation16], 128
        $region88: #{tpu_custom_call.1} parent=43 // pred_fallthru
          _
        // Predicated region
        $region89: #{tpu_custom_call.1} parent=43 // pred_check
          %p1476 = pneg %p221
        $region90: #{tpu_custom_call.1} parent=43 // pred_check_branch
          %1478 = sbr.rel (%p1476) target = $region92
        $region91: #{tpu_custom_call.1} parent=43 // pred_region
          %1479 = dma.done [#allocation16], 128
        $region92: #{tpu_custom_call.1} parent=43 // pred_fallthru
          _
      $region44: #{tpu_custom_call.1} parent=5 // pred_fallthru
        _
      %p1480 = scmp.le.s32.totalorder 2, %s25
      // Predicated region
      $region93: #{tpu_custom_call.1} parent=5 // pred_check
        %p1481 = pneg %p1480
      $region94: #{tpu_custom_call.1} parent=5 // pred_check_branch
        %1483 = sbr.rel (%p1481) target = $region96
      $region95: #{tpu_custom_call.1} parent=5 // pred_region
        %s1484 = ssub.s32 %s25, 2
        // Predicated region
        $region97: #{tpu_custom_call.1} parent=95 // pred_check
          %p1485 = pneg %p185
        $region98: #{tpu_custom_call.1} parent=95 // pred_check_branch
          %1487 = sbr.rel (%p1485) target = $region100
        $region99: #{tpu_custom_call.1} parent=95 // pred_region
          %s1488 = sand.u32 %s170, 1
          %s1489 = scalar_lea.sflag [#allocation5], %s1488
          %s1490 = sand.u32 %s170, 1
          %s1491 = smul.addr %s1490, 32
          %s1492 = scalar_lea.vmem [#allocation14], %s1491
          %1493 = dma.done %s1489, 512
        $region100: #{tpu_custom_call.1} parent=95 // pred_fallthru
          _
      $region96: #{tpu_custom_call.1} parent=5 // pred_fallthru
        _
    $region6: #{tpu_custom_call.1} parent=1 // loop_footer
      %s29 = sadd.s32 1, %s25
    $region7: #{tpu_custom_call.1} parent=1 // loop_footer_branch
      %24 = sbr.rel target = $region3
    $region8: #{tpu_custom_call.1} parent=1 // loop_exit
      _
    %1494 = vsyncpa [#allocation4], 1
    %s1495 = scalar_lea.sflag [#allocation4], 1
    %1496 = vsyncpa %s1495, 1
    %1497 = vsyncpa [#allocation7], 1
    %1498 = vsyncpa [#allocation10], 1
    %1499 = vsyncpa [#allocation13], 1
    %1500 = vsyncpa [#allocation5], 1
    %s1501 = scalar_lea.sflag [#allocation5], 1
    %1502 = vsyncpa %s1501, 1
    %1503 = vsyncpa [#allocation16], 1

</llo_original>
